<compile_context>
chip_gen: v7x
topology: tpu7x:2x2x1
jax: 0.10.0
libtpu: 0.0.40
codegen_flags: <defaults>
</compile_context>

<pallas_src>
import functools

import numpy as np
import jax
import jax.numpy as jnp
from jax import lax
from jax.experimental import pallas as pl
from jax.experimental.pallas import tpu as pltpu

_NEG_INF = -1e30  # finite sentinel: exp(-1e30 - m) underflows to 0 in f32


# ------------------------------ fused kernel ---------------------------------
def _simclr_fused_kernel(x_ref, w_ref, out_ref, feats_ref, acc_ref,
                         *, batch_size, inv_temp, tm, inv_n):
    i = pl.program_id(0)
    n = feats_ref.shape[0]                                  # static N

    @pl.when(i == 0)
    def _():
        # One-shot projection of all N rows: f32 MXU accumulation, bf16 store.
        feats_ref[...] = jnp.dot(
            x_ref[...], w_ref[...],
            preferred_element_type=jnp.float32).astype(feats_ref.dtype)
        acc_ref[...] = jnp.zeros_like(acc_ref)

    row0 = pl.multiple_of(i * tm, tm)
    fq = feats_ref[pl.ds(row0, tm), :]                      # [tm, D] bf16
    # Fold 1/T into the row-side operand only (cheap [tm, D] scale).
    fq = (fq.astype(jnp.float32) * inv_temp).astype(feats_ref.dtype)

    # s_t[c, r] = sim(candidate c, query row0 + r) / T  ->  [N, tm]
    # (contract dim 1 of both operands: no transposed copy of feats.)
    s_t = lax.dot_general(feats_ref[...], fq,
                          dimension_numbers=(((1,), (1,)), ((), ())),
                          preferred_element_type=jnp.float32)

    # Broadcasted index vectors (not full-tile iotas).
    cand = lax.broadcasted_iota(jnp.int32, (n, 1), 0)       # candidate ids
    qrow = lax.broadcasted_iota(jnp.int32, (1, tm), 1) + row0
    delta = cand - qrow                                     # [N, tm]
    diag = delta == 0
    # n_views == 2: the positive of row r is r +- batch_size.
    # TODO(synk): n_views > 2 (PyTorch CE(label=0) then keeps only the first
    # same-sample column; here there is exactly one).
    pos = jnp.abs(delta) == batch_size

    # Per-query-row masked logsumexp over the off-diagonal entries (f32 math),
    # reductions over sublanes (axis 0) -> lane-dense [1, tm] results.
    masked = jnp.where(diag, _NEG_INF, s_t)
    m = jnp.max(masked, axis=0, keepdims=True)              # [1, tm]
    l = jnp.sum(jnp.exp(masked - m), axis=0, keepdims=True) # [1, tm]
    lse = m + jnp.log(l)
    p = jnp.sum(jnp.where(pos, s_t, 0.0), axis=0, keepdims=True)  # positive/T

    acc_ref[...] += jnp.sum(lse - p, axis=1, keepdims=True)       # [1, 1]

    @pl.when(i == pl.num_programs(0) - 1)
    def _():
        out_ref[...] = acc_ref[...] * inv_n                 # mean over N rows


# --------------------------------- wrapper ------------------------------------
def simclr_loss_pallas(views, w, *, n_views, temperature, tm=128):
    """views: list of [B, C, H, W] arrays; w: [C*H*W, D] synthetic net weights."""
    assert n_views == 2, "kernel implements the n_views == 2 NT-Xent loss"
    x = jnp.concatenate(views, axis=0)                      # [N, C, H, W]
    N = x.shape[0]
    batch_size = N // n_views
    F = int(np.prod(x.shape[1:]))
    D = int(w.shape[1])

    tm = min(tm, N)
    assert N % tm == 0 and tm % 16 == 0
    assert D % 128 == 0 and F % 128 == 0
    # Full VMEM residency of x, W (double-buffered) and feats.
    resident_bytes = 2 * (N * F * 2) + 2 * (F * D * 2) + N * D * 2
    assert resident_bytes < 24 * 1024 * 1024, (
        "TODO(synk): tile the projection / stream x for larger N*F")

    # bf16 MXU operands (halves HBM/DMA bytes); all accumulation stays in f32.
    # NOTE: feats is bf16 on both sides of the similarity; at very small
    # temperature (< 0.1) switch the feats scratch to f32 for tighter error.
    x_flat = x.reshape(N, F).astype(jnp.bfloat16)
    w_b = w.astype(jnp.bfloat16)

    kernel = functools.partial(
        _simclr_fused_kernel,
        batch_size=batch_size,
        inv_temp=float(1.0 / temperature),
        tm=tm,
        inv_n=float(1.0 / N),
    )
    cost = pl.CostEstimate(
        flops=2 * N * F * D + 2 * N * N * D,
        transcendentals=N * N + N,
        bytes_accessed=N * F * 2 + F * D * 2 + 4,
    )

    out = pl.pallas_call(
        kernel,
        out_shape=jax.ShapeDtypeStruct((1, 1), jnp.float32),
        grid_spec=pltpu.PrefetchScalarGridSpec(
            num_scalar_prefetch=0,
            grid=(N // tm,),
            in_specs=[
                pl.BlockSpec((N, F), lambda i: (0, 0)),     # x: resident, 1 DMA
                pl.BlockSpec((F, D), lambda i: (0, 0)),     # W: resident, 1 DMA
            ],
            out_specs=pl.BlockSpec((1, 1), lambda i: (0, 0)),
            scratch_shapes=[
                pltpu.VMEM((N, D), jnp.bfloat16),           # feats (never hits HBM)
                pltpu.VMEM((1, 1), jnp.float32),            # running loss sum
            ],
        ),
        # "arbitrary": feats is written at i == 0 and read by all later steps,
        # so the grid axis must run sequentially on one core.
        compiler_params=pltpu.CompilerParams(
            dimension_semantics=("arbitrary",),
            vmem_limit_bytes=32 * 1024 * 1024,
        ),
        cost_estimate=cost,
    )(x_flat, w_b)
    return out[0, 0]


# ------------------------------ numpy reference -------------------------------
def simclr_loss_reference(views, w, *, n_views, temperature):
    """NumPy f32 reference replicating the PyTorch boolean-mask logic literally."""
    x = np.concatenate([np.asarray(v, dtype=np.float32) for v in views], axis=0)
    N = x.shape[0]
    B = N // n_views
    feats = x.reshape(N, -1) @ np.asarray(w, dtype=np.float32)

    labels = np.concatenate([np.arange(B) for _ in range(n_views)], axis=0)
    labels = labels[None, :] == labels[:, None]
    sim = feats @ feats.T
    mask = ~np.eye(N, dtype=bool)
    labels = labels[mask].reshape(N, -1)
    sim = sim[mask].reshape(N, -1)
    positives = sim[labels].reshape(N, -1)
    negatives = sim[~labels].reshape(N, -1)
    logits = np.concatenate([positives, negatives], axis=1) / temperature

    # CrossEntropyLoss with target 0, reduction='mean'
    m = logits.max(axis=1, keepdims=True)
    lse = (m + np.log(np.exp(logits - m).sum(axis=1, keepdims=True)))[:, 0]
    return float(np.mean(lse - logits[:, 0]))


if __name__ == "__main__":
    n_views = 2
    temperature = 0.5
    B, C, H, W = 128, 4, 16, 16        # per-view batch 128 -> N = 256, F = 1024
    D = 128                            # feature dim of the synthetic net
    F = C * H * W

    key = jax.random.PRNGKey(0)
    k1, k2, kw = jax.random.split(key, 3)
    view0 = 0.1 * jax.random.normal(k1, (B, C, H, W), dtype=jnp.float32)
    view1 = 0.1 * jax.random.normal(k2, (B, C, H, W), dtype=jnp.float32)
    w_net = jax.random.normal(kw, (F, D), dtype=jnp.float32) / jnp.sqrt(F)

    loss = simclr_loss_pallas([view0, view1], w_net,
                              n_views=n_views, temperature=temperature)
    loss = jax.block_until_ready(loss)

    ref = simclr_loss_reference([view0, view1], w_net,
                                n_views=n_views, temperature=temperature)
    assert np.isfinite(float(loss))
    # bf16 MXU operands (f32 accumulation) -> small tolerance vs pure-f32 ref.
    assert abs(float(loss) - ref) < 5e-2, (float(loss), ref)
    print("KERNEL_OK")
</pallas_src>

<mosaic_0001>
module attributes {stable_mosaic.version = 11 : i64} {
  func.func @_simclr_fused_kernel(%arg0: i32, %arg1: memref<256x1024xbf16, #tpu.memory_space<vmem>>, %arg2: memref<1024x128xbf16, #tpu.memory_space<vmem>>, %arg3: memref<1x1xf32, #tpu.memory_space<vmem>>, %arg4: memref<256x128xbf16, #tpu.memory_space<vmem>>, %arg5: memref<1x1xf32, #tpu.memory_space<vmem>>) attributes {dimension_semantics = [#tpu.dimension_semantics<arbitrary>], iteration_bounds = array<i64: 2>, scalar_prefetch = 0 : i64, scratch_operands = 2 : i64, tpu.core_type = #tpu.core_type<tc>, window_params = [{pipeline_mode = #tpu.pipeline_mode<synchronous>, transform_indices = @transform_0, window_bounds = array<i64: 256, 1024>}, {pipeline_mode = #tpu.pipeline_mode<synchronous>, transform_indices = @transform_1, window_bounds = array<i64: 1024, 128>}, {pipeline_mode = #tpu.pipeline_mode<synchronous>, transform_indices = @transform_2, window_bounds = array<i64: 1, 1>}]} {
    %c0_i32 = arith.constant 0 : i32
    %0 = arith.cmpi eq, %arg0, %c0_i32 : i32
    %1 = arith.extui %0 : i1 to i32
    %c0_i32_0 = arith.constant 0 : i32
    %2 = arith.cmpi ne, %1, %c0_i32_0 : i32
    scf.if %2 {
      %c0_17 = arith.constant 0 : index
      %c0_18 = arith.constant 0 : index
      %49 = vector.load %arg1[%c0_17, %c0_18] : memref<256x1024xbf16, #tpu.memory_space<vmem>>, vector<256x1024xbf16>
      %c0_19 = arith.constant 0 : index
      %c0_20 = arith.constant 0 : index
      %50 = vector.load %arg2[%c0_19, %c0_20] : memref<1024x128xbf16, #tpu.memory_space<vmem>>, vector<1024x128xbf16>
      %cst_21 = arith.constant dense<0.000000e+00> : vector<256x128xf32>
      %51 = tpu.matmul %49, %50, %cst_21 {dimension_numbers = #tpu.dot_dimension_numbers<[1], [0], [0], [1], [0, 0, 1, 1], [], []>} : vector<256x1024xbf16>, vector<1024x128xbf16>, vector<256x128xf32> -> vector<256x128xf32>
      %52 = arith.truncf %51 : vector<256x128xf32> to vector<256x128xbf16>
      %c0_22 = arith.constant 0 : index
      %c0_23 = arith.constant 0 : index
      %53 = vector.load %arg4[%c0_22, %c0_23] : memref<256x128xbf16, #tpu.memory_space<vmem>>, vector<256x128xbf16>
      tpu.vector_store %arg4[%c0_22, %c0_23], %52 {strides = array<i32>} : memref<256x128xbf16, #tpu.memory_space<vmem>>, vector<256x128xbf16>,
      %cst_24 = arith.constant 0.000000e+00 : f32
      %54 = vector.broadcast %cst_24 : f32 to vector<1x1xf32>
      %c0_25 = arith.constant 0 : index
      %c0_26 = arith.constant 0 : index
      %55 = vector.load %arg5[%c0_25, %c0_26] : memref<1x1xf32, #tpu.memory_space<vmem>>, vector<1x1xf32>
      tpu.vector_store %arg5[%c0_25, %c0_26], %54 {strides = array<i32>} : memref<1x1xf32, #tpu.memory_space<vmem>>, vector<1x1xf32>,
    } else {
    }
    %c128_i32 = arith.constant 128 : i32
    %3 = arith.muli %arg0, %c128_i32 : i32
    %4 = tpu.assume_multiple %3, 128 : i32
    %5 = arith.index_cast %4 : i32 to index
    %c0 = arith.constant 0 : index
    %6 = vector.load %arg4[%5, %c0] : memref<256x128xbf16, #tpu.memory_space<vmem>>, vector<128x128xbf16>
    %7 = arith.extf %6 : vector<128x128xbf16> to vector<128x128xf32>
    %cst = arith.constant 2.000000e+00 : f32
    %8 = vector.broadcast %cst : f32 to vector<128x128xf32>
    %9 = arith.mulf %7, %8 : vector<128x128xf32>
    %10 = arith.truncf %9 : vector<128x128xf32> to vector<128x128xbf16>
    %c0_1 = arith.constant 0 : index
    %c0_2 = arith.constant 0 : index
    %11 = vector.load %arg4[%c0_1, %c0_2] : memref<256x128xbf16, #tpu.memory_space<vmem>>, vector<256x128xbf16>
    %cst_3 = arith.constant dense<0.000000e+00> : vector<256x128xf32>
    %12 = tpu.matmul %11, %10, %cst_3 {dimension_numbers = #tpu.dot_dimension_numbers<[1], [1], [0], [0], [0, 0, 1, 0], [], []>} : vector<256x128xbf16>, vector<128x128xbf16>, vector<256x128xf32> -> vector<256x128xf32>
    %13 = tpu.iota {dimensions = array<i32: 0>} : vector<256x1xi32>
    %14 = tpu.iota {dimensions = array<i32: 1>} : vector<1x128xi32>
    %15 = vector.broadcast %4 : i32 to vector<1x128xi32>
    %16 = arith.addi %14, %15 : vector<1x128xi32>
    %17 = vector.broadcast %13 : vector<256x1xi32> to vector<256x128xi32>
    %18 = vector.broadcast %16 : vector<1x128xi32> to vector<256x128xi32>
    %19 = arith.subi %17, %18 : vector<256x128xi32>
    %c0_i32_4 = arith.constant 0 : i32
    %20 = vector.broadcast %c0_i32_4 : i32 to vector<256x128xi32>
    %21 = arith.cmpi eq, %19, %20 : vector<256x128xi32>
    %22 = math.absi %19 : vector<256x128xi32>
    %c128_i32_5 = arith.constant 128 : i32
    %23 = vector.broadcast %c128_i32_5 : i32 to vector<256x128xi32>
    %24 = arith.cmpi eq, %22, %23 : vector<256x128xi32>
    %cst_6 = arith.constant -1.000000e+30 : f32
    %25 = vector.broadcast %cst_6 : f32 to vector<256x128xf32>
    %26 = arith.select %21, %25, %12 : vector<256x128xi1>, vector<256x128xf32>
    %cst_7 = arith.constant dense<0xFF800000> : vector<128xf32>
    %27 = vector.multi_reduction <maximumf>, %26, %cst_7 [0] : vector<256x128xf32> to vector<128xf32>
    %28 = vector.shape_cast %27 : vector<128xf32> to vector<1x128xf32>
    %29 = vector.broadcast %28 : vector<1x128xf32> to vector<256x128xf32>
    %30 = arith.subf %26, %29 : vector<256x128xf32>
    %31 = math.exp %30 : vector<256x128xf32>
    %cst_8 = arith.constant dense<0.000000e+00> : vector<128xf32>
    %32 = vector.multi_reduction <add>, %31, %cst_8 [0] : vector<256x128xf32> to vector<128xf32>
    %33 = vector.shape_cast %32 : vector<128xf32> to vector<1x128xf32>
    %34 = math.log %33 : vector<1x128xf32>
    %35 = arith.addf %28, %34 : vector<1x128xf32>
    %cst_9 = arith.constant 0.000000e+00 : f32
    %36 = vector.broadcast %cst_9 : f32 to vector<256x128xf32>
    %37 = arith.select %24, %12, %36 : vector<256x128xi1>, vector<256x128xf32>
    %cst_10 = arith.constant dense<0.000000e+00> : vector<128xf32>
    %38 = vector.multi_reduction <add>, %37, %cst_10 [0] : vector<256x128xf32> to vector<128xf32>
    %39 = vector.shape_cast %38 : vector<128xf32> to vector<1x128xf32>
    %c0_11 = arith.constant 0 : index
    %c0_12 = arith.constant 0 : index
    %40 = vector.load %arg5[%c0_11, %c0_12] : memref<1x1xf32, #tpu.memory_space<vmem>>, vector<1x1xf32>
    %41 = arith.subf %35, %39 : vector<1x128xf32>
    %cst_13 = arith.constant dense<0.000000e+00> : vector<1xf32>
    %42 = vector.multi_reduction <add>, %41, %cst_13 [1] : vector<1x128xf32> to vector<1xf32>
    %43 = vector.shape_cast %42 : vector<1xf32> to vector<1x1xf32>
    %44 = arith.addf %40, %43 : vector<1x1xf32>
    %c0_14 = arith.constant 0 : index
    %c0_15 = arith.constant 0 : index
    %45 = vector.load %arg5[%c0_14, %c0_15] : memref<1x1xf32, #tpu.memory_space<vmem>>, vector<1x1xf32>
    tpu.vector_store %arg5[%c0_14, %c0_15], %44 {strides = array<i32>} : memref<1x1xf32, #tpu.memory_space<vmem>>, vector<1x1xf32>,
    %c1_i32 = arith.constant 1 : i32
    %46 = arith.cmpi eq, %arg0, %c1_i32 : i32
    %47 = arith.extui %46 : i1 to i32
    %c0_i32_16 = arith.constant 0 : i32
    %48 = arith.cmpi ne, %47, %c0_i32_16 : i32
    scf.if %48 {
      %c0_17 = arith.constant 0 : index
      %c0_18 = arith.constant 0 : index
      %49 = vector.load %arg5[%c0_17, %c0_18] : memref<1x1xf32, #tpu.memory_space<vmem>>, vector<1x1xf32>
      %cst_19 = arith.constant 3.906250e-03 : f32
      %50 = vector.broadcast %cst_19 : f32 to vector<1x1xf32>
      %51 = arith.mulf %49, %50 : vector<1x1xf32>
      %c0_20 = arith.constant 0 : index
      %c0_21 = arith.constant 0 : index
      %52 = vector.load %arg3[%c0_20, %c0_21] : memref<1x1xf32, #tpu.memory_space<vmem>>, vector<1x1xf32>
      tpu.vector_store %arg3[%c0_20, %c0_21], %51 {strides = array<i32>} : memref<1x1xf32, #tpu.memory_space<vmem>>, vector<1x1xf32>,
    } else {
    }
    return
  }
  func.func @transform_0(%arg0: i32) -> (i32, i32) {
    %c0_i32 = arith.constant 0 : i32
    %c0_i32_0 = arith.constant 0 : i32
    %c0_i32_1 = arith.constant 0 : i32
    return %c0_i32, %c0_i32_0 : i32, i32
  }
  func.func @transform_1(%arg0: i32) -> (i32, i32) {
    %c0_i32 = arith.constant 0 : i32
    %c0_i32_0 = arith.constant 0 : i32
    %c0_i32_1 = arith.constant 0 : i32
    return %c0_i32, %c0_i32_0 : i32, i32
  }
  func.func @transform_2(%arg0: i32) -> (i32, i32) {
    %c0_i32 = arith.constant 0 : i32
    %c0_i32_0 = arith.constant 0 : i32
    %c0_i32_1 = arith.constant 0 : i32
    return %c0_i32, %c0_i32_0 : i32, i32
  }
}

</mosaic_0001>

<llo_original>
// kernel: tpu_custom_call.1
$region0: #{tpu_custom_call.1}
  #allocation0 [shape = 'u32[]', space=smem, size = 0x4, offset = 0x4, fixed_abs, tag = 'smem constant byte address 0x4 - core index']
  #allocation1 [shape = 'u32[144,128]{1,0:T(1,128)}', space=vmem, size = 0x12000, scoped, tag = 'internal scratch']
  #allocation2 [shape = 'bf16[256,128]{1,0:T(16,128)(2,1)}', space=vmem, size = 0x10000, scoped, tag = 'scratch operand']
  #allocation3 [shape = 'f32[1,1]{1,0:T(1,128)}', space=vmem, size = 0x200, scoped, tag = 'scratch operand']
  %s0 = inlined_call_operand.hbm [shape: bf16[256,1024], index: 0, kind: input, shape index: {}]
  %s1 = inlined_call_operand.hbm [shape: bf16[1024,128], index: 1, kind: input, shape index: {}]
  %s2 = inlined_call_operand.hbm [shape: f32[1,1], index: 2, kind: output, shape index: {}]
  %s3 = sld [smem:[#allocation0]]
  $region57: #{tpu_custom_call.1} parent=0
    _
  %s5 = ssub.s32 1, %s3
  %s6 = scalar_select 0, %s5, %s3
  $region1: #{tpu_custom_call.1} parent=0
    #allocation4 [shape = 'u8[524288]{0}', space=vmem, size = 0x80000, scoped, tag = 'input window, operand 0, single buffered']
    #allocation5 [shape = 's32[2]{0}', space=sflag, size = 0x8, scoped, tag = 'scoped memory for tpu_custom_call.1']
    #allocation6 [shape = 's32[2]{0}', space=sflag, size = 0x8, scoped, tag = 'scoped memory for tpu_custom_call.1']
    #allocation7 [shape = 'u8[262144]{0}', space=vmem, size = 0x40000, scoped, tag = 'input window, operand 1, single buffered']
    #allocation8 [shape = 's32[1]{0}', space=sflag, size = 0x4, scoped, tag = 'scoped memory for tpu_custom_call.1']
    #allocation9 [shape = 'u8[512]{0}', space=vmem, size = 0x400, scoped, tag = 'output window, operand 0, single buffered']
    %7 = vsyncpa [#allocation5], 0
    %8 = vsyncpa [#allocation8], 0
    %9 = vsyncpa [#allocation6], 0
    loop: start=0, step=1, limit=4
    $region2: #{tpu_custom_call.1} parent=1 // loop_pre_header
      _
    $region3: #{tpu_custom_call.1} parent=1 // loop_header
      %s11 = sphi 0, %s15
      %p12 = scmp.ge.s32.totalorder %s11, 4
      %s19 = sphi 0, %s19
      %s21 = sphi 0, %s19
      %s22 = sphi 0, %s21
      %s36 = sphi 0, %s22
      %s40 = sphi 0, %s40
      %s42 = sphi 0, %s40
      %s43 = sphi 0, %s42
      %s57 = sphi 0, %s43
      %s61 = sphi 0, %s61
      %s63 = sphi 0, %s61
      %s64 = sphi 0, %s63
      %s78 = sphi 0, %s64
    $region4: #{tpu_custom_call.1} parent=1 // loop_header_branch
      %14 = sbr.rel (%p12) target = $region8
    $region5: #{tpu_custom_call.1} parent=1 // loop_body
      %s16 = ssub.s32 %s11, 1
      %s17 = ssub.s32 %s11, 2
      %s18 = sadd.s32 %s11, 1
      %s20 = sadd.s32 %s19, 1
      %p23 = scmp.eq.s32.totalorder %s11, 1
      %p24 = scmp.ne.s32.totalorder %s19, %s21
      %p25 = scmp.eq.s32.totalorder %s11, 0
      %p26 = por %p24, %p25
      %p27 = scmp.ne.s32.totalorder %s19, %s21
      %p28 = scmp.eq.s32.totalorder %s16, 1
      %p29 = por %p27, %p28
      %p30 = scmp.ne.s32.totalorder %s21, %s22
      %p31 = scmp.eq.s32.totalorder %s16, 0
      %p32 = por %p30, %p31
      %p33 = scmp.ne.s32.totalorder %s21, %s22
      %p34 = scmp.eq.s32.totalorder %s17, 1
      %p35 = por %p33, %p34
      %p37 = scmp.ne.s32.totalorder %s22, %s36
      %p38 = scmp.eq.s32.totalorder %s17, 0
      %p39 = por %p37, %p38
      %s41 = sadd.s32 %s40, 1
      %p44 = scmp.eq.s32.totalorder %s11, 1
      %p45 = scmp.ne.s32.totalorder %s40, %s42
      %p46 = scmp.eq.s32.totalorder %s11, 0
      %p47 = por %p45, %p46
      %p48 = scmp.ne.s32.totalorder %s40, %s42
      %p49 = scmp.eq.s32.totalorder %s16, 1
      %p50 = por %p48, %p49
      %p51 = scmp.ne.s32.totalorder %s42, %s43
      %p52 = scmp.eq.s32.totalorder %s16, 0
      %p53 = por %p51, %p52
      %p54 = scmp.ne.s32.totalorder %s42, %s43
      %p55 = scmp.eq.s32.totalorder %s17, 1
      %p56 = por %p54, %p55
      %p58 = scmp.ne.s32.totalorder %s43, %s57
      %p59 = scmp.eq.s32.totalorder %s17, 0
      %p60 = por %p58, %p59
      %s62 = sadd.s32 %s61, 1
      %p65 = scmp.eq.s32.totalorder %s11, 1
      %p66 = scmp.ne.s32.totalorder %s61, %s63
      %p67 = scmp.eq.s32.totalorder %s11, 0
      %p68 = por %p66, %p67
      %p69 = scmp.ne.s32.totalorder %s61, %s63
      %p70 = scmp.eq.s32.totalorder %s16, 1
      %p71 = por %p69, %p70
      %p72 = scmp.ne.s32.totalorder %s63, %s64
      %p73 = scmp.eq.s32.totalorder %s16, 0
      %p74 = por %p72, %p73
      %p75 = scmp.ne.s32.totalorder %s63, %s64
      %p76 = scmp.eq.s32.totalorder %s17, 1
      %p77 = por %p75, %p76
      %p79 = scmp.ne.s32.totalorder %s64, %s78
      %p80 = scmp.eq.s32.totalorder %s17, 0
      %p81 = por %p79, %p80
      %p82 = scmp.le.s32.totalorder 1, %s11
      %p83 = scmp.lt.s32.totalorder %s11, 3
      %p84 = pnand %p82, %p83
      %p85 = pneg %p84
      // Predicated region
      $region9: #{tpu_custom_call.1} parent=5 // pred_check
        _
      $region10: #{tpu_custom_call.1} parent=5 // pred_check_branch
        %87 = sbr.rel (%p84) target = $region12
      $region11: #{tpu_custom_call.1} parent=5 // pred_region
        %s88 = ssub.s32 %s11, 1
        // Predicated region
        $region13: #{tpu_custom_call.1} parent=11 // pred_check
          %p89 = pneg %p32
        $region14: #{tpu_custom_call.1} parent=11 // pred_check_branch
          %91 = sbr.rel (%p89) target = $region16
        $region15: #{tpu_custom_call.1} parent=11 // pred_region
          %s93 = ssub.s32 16384, 16384
          %94 = vsyncadd [#allocation5], %s93
          %s95 = sshll.u32 [#allocation4], 4
          %s96 = int_to_ptr.vmem [resolvable:$true] %s95
          %101 = dma.hbm_to_vmem [thread:$0]  %s0, 16384, %s96, [#allocation5], 512, 512, 32
        $region16: #{tpu_custom_call.1} parent=11 // pred_fallthru
          _
        // Predicated region
        $region17: #{tpu_custom_call.1} parent=11 // pred_check
          %p102 = pneg %p53
        $region18: #{tpu_custom_call.1} parent=11 // pred_check_branch
          %104 = sbr.rel (%p102) target = $region20
        $region19: #{tpu_custom_call.1} parent=11 // pred_region
          %s106 = ssub.s32 8192, 8192
          %107 = vsyncadd [#allocation8], %s106
          %s108 = sshll.u32 [#allocation7], 4
          %s109 = int_to_ptr.vmem [resolvable:$true] %s108
          %114 = dma.hbm_to_vmem [thread:$0]  %s1, 8192, %s109, [#allocation8], 64, 64, 4
        $region20: #{tpu_custom_call.1} parent=11 // pred_fallthru
          _
      $region12: #{tpu_custom_call.1} parent=5 // pred_fallthru
        _
      %p115 = scmp.lt.s32.totalorder %s11, 2
      // Predicated region
      $region21: #{tpu_custom_call.1} parent=5 // pred_check
        %p116 = pneg %p115
      $region22: #{tpu_custom_call.1} parent=5 // pred_check_branch
        %118 = sbr.rel (%p116) target = $region24
      $region23: #{tpu_custom_call.1} parent=5 // pred_region
        _
      $region24: #{tpu_custom_call.1} parent=5 // pred_fallthru
        _
      %p119 = scmp.le.s32.totalorder 1, %s11
      %p120 = scmp.lt.s32.totalorder %s11, 3
      %p121 = pnand %p119, %p120
      %p122 = pneg %p121
      // Predicated region
      $region25: #{tpu_custom_call.1} parent=5 // pred_check
        _
      $region26: #{tpu_custom_call.1} parent=5 // pred_check_branch
        %124 = sbr.rel (%p121) target = $region28
      $region27: #{tpu_custom_call.1} parent=5 // pred_region
        %s125 = ssub.s32 %s11, 1
        // Predicated region
        $region29: #{tpu_custom_call.1} parent=27 // pred_check
          %p126 = pneg %p32
        $region30: #{tpu_custom_call.1} parent=27 // pred_check_branch
          %128 = sbr.rel (%p126) target = $region32
        $region31: #{tpu_custom_call.1} parent=27 // pred_region
          %129 = dma.done [#allocation5], 16384
        $region32: #{tpu_custom_call.1} parent=27 // pred_fallthru
          _
        // Predicated region
        $region33: #{tpu_custom_call.1} parent=27 // pred_check
          %p130 = pneg %p53
        $region34: #{tpu_custom_call.1} parent=27 // pred_check_branch
          %132 = sbr.rel (%p130) target = $region36
        $region35: #{tpu_custom_call.1} parent=27 // pred_region
          %133 = dma.done [#allocation8], 8192
        $region36: #{tpu_custom_call.1} parent=27 // pred_fallthru
          _
        %p134 = pneg %p32
        %p135 = pneg %p29
        %p136 = pneg %p53
        %p137 = pneg %p50
        %p138 = pneg %p74
        %p139 = pneg %p71
        %p141 = scmp.eq.s32.totalorder %s16, 0
        // Predicated region
        $region37: #{tpu_custom_call.1} parent=27 // pred_check
          %p142 = pneg %p141
        $region38: #{tpu_custom_call.1} parent=27 // pred_check_branch
          %144 = sbr.rel (%p142) target = $region40
        $region39: #{tpu_custom_call.1} parent=27 // pred_region
          %v145 = vld [vmem:[#allocation4] sm:$0xff]
          %v146 = vld [vmem:[#allocation4 + $0x8] sm:$0xff]
          %v147 = vld [vmem:[#allocation4 + $0x10] sm:$0xff]
          %v148 = vld [vmem:[#allocation4 + $0x18] sm:$0xff]
          %v149 = vld [vmem:[#allocation4 + $0x20] sm:$0xff]
          %v150 = vld [vmem:[#allocation4 + $0x28] sm:$0xff]
          %v151 = vld [vmem:[#allocation4 + $0x30] sm:$0xff]
          %v152 = vld [vmem:[#allocation4 + $0x38] sm:$0xff]
          %v153 = vld [vmem:[#allocation4 + $0x40] sm:$0xff]
          %v154 = vld [vmem:[#allocation4 + $0x48] sm:$0xff]
          %v155 = vld [vmem:[#allocation4 + $0x50] sm:$0xff]
          %v156 = vld [vmem:[#allocation4 + $0x58] sm:$0xff]
          %v157 = vld [vmem:[#allocation4 + $0x60] sm:$0xff]
          %v158 = vld [vmem:[#allocation4 + $0x68] sm:$0xff]
          %v159 = vld [vmem:[#allocation4 + $0x70] sm:$0xff]
          %v160 = vld [vmem:[#allocation4 + $0x78] sm:$0xff]
          %v161 = vld [vmem:[#allocation4 + $0x80] sm:$0xff]
          %v162 = vld [vmem:[#allocation4 + $0x88] sm:$0xff]
          %v163 = vld [vmem:[#allocation4 + $0x90] sm:$0xff]
          %v164 = vld [vmem:[#allocation4 + $0x98] sm:$0xff]
          %v165 = vld [vmem:[#allocation4 + $0xa0] sm:$0xff]
          %v166 = vld [vmem:[#allocation4 + $0xa8] sm:$0xff]
          %v167 = vld [vmem:[#allocation4 + $0xb0] sm:$0xff]
          %v168 = vld [vmem:[#allocation4 + $0xb8] sm:$0xff]
          %v169 = vld [vmem:[#allocation4 + $0xc0] sm:$0xff]
          %v170 = vld [vmem:[#allocation4 + $0xc8] sm:$0xff]
          %v171 = vld [vmem:[#allocation4 + $0xd0] sm:$0xff]
          %v172 = vld [vmem:[#allocation4 + $0xd8] sm:$0xff]
          %v173 = vld [vmem:[#allocation4 + $0xe0] sm:$0xff]
          %v174 = vld [vmem:[#allocation4 + $0xe8] sm:$0xff]
          %v175 = vld [vmem:[#allocation4 + $0xf0] sm:$0xff]
          %v176 = vld [vmem:[#allocation4 + $0xf8] sm:$0xff]
          %v177 = vld [vmem:[#allocation4 + $0x100] sm:$0xff]
          %v178 = vld [vmem:[#allocation4 + $0x108] sm:$0xff]
          %v179 = vld [vmem:[#allocation4 + $0x110] sm:$0xff]
          %v180 = vld [vmem:[#allocation4 + $0x118] sm:$0xff]
          %v181 = vld [vmem:[#allocation4 + $0x120] sm:$0xff]
          %v182 = vld [vmem:[#allocation4 + $0x128] sm:$0xff]
          %v183 = vld [vmem:[#allocation4 + $0x130] sm:$0xff]
          %v184 = vld [vmem:[#allocation4 + $0x138] sm:$0xff]
          %v185 = vld [vmem:[#allocation4 + $0x140] sm:$0xff]
          %v186 = vld [vmem:[#allocation4 + $0x148] sm:$0xff]
          %v187 = vld [vmem:[#allocation4 + $0x150] sm:$0xff]
          %v188 = vld [vmem:[#allocation4 + $0x158] sm:$0xff]
          %v189 = vld [vmem:[#allocation4 + $0x160] sm:$0xff]
          %v190 = vld [vmem:[#allocation4 + $0x168] sm:$0xff]
          %v191 = vld [vmem:[#allocation4 + $0x170] sm:$0xff]
          %v192 = vld [vmem:[#allocation4 + $0x178] sm:$0xff]
          %v193 = vld [vmem:[#allocation4 + $0x180] sm:$0xff]
          %v194 = vld [vmem:[#allocation4 + $0x188] sm:$0xff]
          %v195 = vld [vmem:[#allocation4 + $0x190] sm:$0xff]
          %v196 = vld [vmem:[#allocation4 + $0x198] sm:$0xff]
          %v197 = vld [vmem:[#allocation4 + $0x1a0] sm:$0xff]
          %v198 = vld [vmem:[#allocation4 + $0x1a8] sm:$0xff]
          %v199 = vld [vmem:[#allocation4 + $0x1b0] sm:$0xff]
          %v200 = vld [vmem:[#allocation4 + $0x1b8] sm:$0xff]
          %v201 = vld [vmem:[#allocation4 + $0x1c0] sm:$0xff]
          %v202 = vld [vmem:[#allocation4 + $0x1c8] sm:$0xff]
          %v203 = vld [vmem:[#allocation4 + $0x1d0] sm:$0xff]
          %v204 = vld [vmem:[#allocation4 + $0x1d8] sm:$0xff]
          %v205 = vld [vmem:[#allocation4 + $0x1e0] sm:$0xff]
          %v206 = vld [vmem:[#allocation4 + $0x1e8] sm:$0xff]
          %v207 = vld [vmem:[#allocation4 + $0x1f0] sm:$0xff]
          %v208 = vld [vmem:[#allocation4 + $0x1f8] sm:$0xff]
          %v209 = vld [vmem:[#allocation4 + $0x200] sm:$0xff]
          %v210 = vld [vmem:[#allocation4 + $0x208] sm:$0xff]
          %v211 = vld [vmem:[#allocation4 + $0x210] sm:$0xff]
          %v212 = vld [vmem:[#allocation4 + $0x218] sm:$0xff]
          %v213 = vld [vmem:[#allocation4 + $0x220] sm:$0xff]
          %v214 = vld [vmem:[#allocation4 + $0x228] sm:$0xff]
          %v215 = vld [vmem:[#allocation4 + $0x230] sm:$0xff]
          %v216 = vld [vmem:[#allocation4 + $0x238] sm:$0xff]
          %v217 = vld [vmem:[#allocation4 + $0x240] sm:$0xff]
          %v218 = vld [vmem:[#allocation4 + $0x248] sm:$0xff]
          %v219 = vld [vmem:[#allocation4 + $0x250] sm:$0xff]
          %v220 = vld [vmem:[#allocation4 + $0x258] sm:$0xff]
          %v221 = vld [vmem:[#allocation4 + $0x260] sm:$0xff]
          %v222 = vld [vmem:[#allocation4 + $0x268] sm:$0xff]
          %v223 = vld [vmem:[#allocation4 + $0x270] sm:$0xff]
          %v224 = vld [vmem:[#allocation4 + $0x278] sm:$0xff]
          %v225 = vld [vmem:[#allocation4 + $0x280] sm:$0xff]
          %v226 = vld [vmem:[#allocation4 + $0x288] sm:$0xff]
          %v227 = vld [vmem:[#allocation4 + $0x290] sm:$0xff]
          %v228 = vld [vmem:[#allocation4 + $0x298] sm:$0xff]
          %v229 = vld [vmem:[#allocation4 + $0x2a0] sm:$0xff]
          %v230 = vld [vmem:[#allocation4 + $0x2a8] sm:$0xff]
          %v231 = vld [vmem:[#allocation4 + $0x2b0] sm:$0xff]
          %v232 = vld [vmem:[#allocation4 + $0x2b8] sm:$0xff]
          %v233 = vld [vmem:[#allocation4 + $0x2c0] sm:$0xff]
          %v234 = vld [vmem:[#allocation4 + $0x2c8] sm:$0xff]
          %v235 = vld [vmem:[#allocation4 + $0x2d0] sm:$0xff]
          %v236 = vld [vmem:[#allocation4 + $0x2d8] sm:$0xff]
          %v237 = vld [vmem:[#allocation4 + $0x2e0] sm:$0xff]
          %v238 = vld [vmem:[#allocation4 + $0x2e8] sm:$0xff]
          %v239 = vld [vmem:[#allocation4 + $0x2f0] sm:$0xff]
          %v240 = vld [vmem:[#allocation4 + $0x2f8] sm:$0xff]
          %v241 = vld [vmem:[#allocation4 + $0x300] sm:$0xff]
          %v242 = vld [vmem:[#allocation4 + $0x308] sm:$0xff]
          %v243 = vld [vmem:[#allocation4 + $0x310] sm:$0xff]
          %v244 = vld [vmem:[#allocation4 + $0x318] sm:$0xff]
          %v245 = vld [vmem:[#allocation4 + $0x320] sm:$0xff]
          %v246 = vld [vmem:[#allocation4 + $0x328] sm:$0xff]
          %v247 = vld [vmem:[#allocation4 + $0x330] sm:$0xff]
          %v248 = vld [vmem:[#allocation4 + $0x338] sm:$0xff]
          %v249 = vld [vmem:[#allocation4 + $0x340] sm:$0xff]
          %v250 = vld [vmem:[#allocation4 + $0x348] sm:$0xff]
          %v251 = vld [vmem:[#allocation4 + $0x350] sm:$0xff]
          %v252 = vld [vmem:[#allocation4 + $0x358] sm:$0xff]
          %v253 = vld [vmem:[#allocation4 + $0x360] sm:$0xff]
          %v254 = vld [vmem:[#allocation4 + $0x368] sm:$0xff]
          %v255 = vld [vmem:[#allocation4 + $0x370] sm:$0xff]
          %v256 = vld [vmem:[#allocation4 + $0x378] sm:$0xff]
          %v257 = vld [vmem:[#allocation4 + $0x380] sm:$0xff]
          %v258 = vld [vmem:[#allocation4 + $0x388] sm:$0xff]
          %v259 = vld [vmem:[#allocation4 + $0x390] sm:$0xff]
          %v260 = vld [vmem:[#allocation4 + $0x398] sm:$0xff]
          %v261 = vld [vmem:[#allocation4 + $0x3a0] sm:$0xff]
          %v262 = vld [vmem:[#allocation4 + $0x3a8] sm:$0xff]
          %v263 = vld [vmem:[#allocation4 + $0x3b0] sm:$0xff]
          %v264 = vld [vmem:[#allocation4 + $0x3b8] sm:$0xff]
          %v265 = vld [vmem:[#allocation4 + $0x3c0] sm:$0xff]
          %v266 = vld [vmem:[#allocation4 + $0x3c8] sm:$0xff]
          %v267 = vld [vmem:[#allocation4 + $0x3d0] sm:$0xff]
          %v268 = vld [vmem:[#allocation4 + $0x3d8] sm:$0xff]
          %v269 = vld [vmem:[#allocation4 + $0x3e0] sm:$0xff]
          %v270 = vld [vmem:[#allocation4 + $0x3e8] sm:$0xff]
          %v271 = vld [vmem:[#allocation4 + $0x3f0] sm:$0xff]
          %v272 = vld [vmem:[#allocation4 + $0x3f8] sm:$0xff]
          %v273 = vld [vmem:[#allocation7] sm:$0xf]
          %v274 = vld [vmem:[#allocation7 + $0x4] sm:$0xf]
          %v275 = vld [vmem:[#allocation7 + $0x8] sm:$0xf]
          %v276 = vld [vmem:[#allocation7 + $0xc] sm:$0xf]
          %v277 = vld [vmem:[#allocation7 + $0x10] sm:$0xf]
          %v278 = vld [vmem:[#allocation7 + $0x14] sm:$0xf]
          %v279 = vld [vmem:[#allocation7 + $0x18] sm:$0xf]
          %v280 = vld [vmem:[#allocation7 + $0x1c] sm:$0xf]
          %v281 = vld [vmem:[#allocation7 + $0x20] sm:$0xf]
          %v282 = vld [vmem:[#allocation7 + $0x24] sm:$0xf]
          %v283 = vld [vmem:[#allocation7 + $0x28] sm:$0xf]
          %v284 = vld [vmem:[#allocation7 + $0x2c] sm:$0xf]
          %v285 = vld [vmem:[#allocation7 + $0x30] sm:$0xf]
          %v286 = vld [vmem:[#allocation7 + $0x34] sm:$0xf]
          %v287 = vld [vmem:[#allocation7 + $0x38] sm:$0xf]
          %v288 = vld [vmem:[#allocation7 + $0x3c] sm:$0xf]
          %v289 = vld [vmem:[#allocation7 + $0x40] sm:$0xf]
          %v290 = vld [vmem:[#allocation7 + $0x44] sm:$0xf]
          %v291 = vld [vmem:[#allocation7 + $0x48] sm:$0xf]
          %v292 = vld [vmem:[#allocation7 + $0x4c] sm:$0xf]
          %v293 = vld [vmem:[#allocation7 + $0x50] sm:$0xf]
          %v294 = vld [vmem:[#allocation7 + $0x54] sm:$0xf]
          %v295 = vld [vmem:[#allocation7 + $0x58] sm:$0xf]
          %v296 = vld [vmem:[#allocation7 + $0x5c] sm:$0xf]
          %v297 = vld [vmem:[#allocation7 + $0x60] sm:$0xf]
          %v298 = vld [vmem:[#allocation7 + $0x64] sm:$0xf]
          %v299 = vld [vmem:[#allocation7 + $0x68] sm:$0xf]
          %v300 = vld [vmem:[#allocation7 + $0x6c] sm:$0xf]
          %v301 = vld [vmem:[#allocation7 + $0x70] sm:$0xf]
          %v302 = vld [vmem:[#allocation7 + $0x74] sm:$0xf]
          %v303 = vld [vmem:[#allocation7 + $0x78] sm:$0xf]
          %v304 = vld [vmem:[#allocation7 + $0x7c] sm:$0xf]
          %v305 = vld [vmem:[#allocation7 + $0x80] sm:$0xf]
          %v306 = vld [vmem:[#allocation7 + $0x84] sm:$0xf]
          %v307 = vld [vmem:[#allocation7 + $0x88] sm:$0xf]
          %v308 = vld [vmem:[#allocation7 + $0x8c] sm:$0xf]
          %v309 = vld [vmem:[#allocation7 + $0x90] sm:$0xf]
          %v310 = vld [vmem:[#allocation7 + $0x94] sm:$0xf]
          %v311 = vld [vmem:[#allocation7 + $0x98] sm:$0xf]
          %v312 = vld [vmem:[#allocation7 + $0x9c] sm:$0xf]
          %v313 = vld [vmem:[#allocation7 + $0xa0] sm:$0xf]
          %v314 = vld [vmem:[#allocation7 + $0xa4] sm:$0xf]
          %v315 = vld [vmem:[#allocation7 + $0xa8] sm:$0xf]
          %v316 = vld [vmem:[#allocation7 + $0xac] sm:$0xf]
          %v317 = vld [vmem:[#allocation7 + $0xb0] sm:$0xf]
          %v318 = vld [vmem:[#allocation7 + $0xb4] sm:$0xf]
          %v319 = vld [vmem:[#allocation7 + $0xb8] sm:$0xf]
          %v320 = vld [vmem:[#allocation7 + $0xbc] sm:$0xf]
          %v321 = vld [vmem:[#allocation7 + $0xc0] sm:$0xf]
          %v322 = vld [vmem:[#allocation7 + $0xc4] sm:$0xf]
          %v323 = vld [vmem:[#allocation7 + $0xc8] sm:$0xf]
          %v324 = vld [vmem:[#allocation7 + $0xcc] sm:$0xf]
          %v325 = vld [vmem:[#allocation7 + $0xd0] sm:$0xf]
          %v326 = vld [vmem:[#allocation7 + $0xd4] sm:$0xf]
          %v327 = vld [vmem:[#allocation7 + $0xd8] sm:$0xf]
          %v328 = vld [vmem:[#allocation7 + $0xdc] sm:$0xf]
          %v329 = vld [vmem:[#allocation7 + $0xe0] sm:$0xf]
          %v330 = vld [vmem:[#allocation7 + $0xe4] sm:$0xf]
          %v331 = vld [vmem:[#allocation7 + $0xe8] sm:$0xf]
          %v332 = vld [vmem:[#allocation7 + $0xec] sm:$0xf]
          %v333 = vld [vmem:[#allocation7 + $0xf0] sm:$0xf]
          %v334 = vld [vmem:[#allocation7 + $0xf4] sm:$0xf]
          %v335 = vld [vmem:[#allocation7 + $0xf8] sm:$0xf]
          %v336 = vld [vmem:[#allocation7 + $0xfc] sm:$0xf]
          %v337 = vld [vmem:[#allocation7 + $0x100] sm:$0xf]
          %v338 = vld [vmem:[#allocation7 + $0x104] sm:$0xf]
          %v339 = vld [vmem:[#allocation7 + $0x108] sm:$0xf]
          %v340 = vld [vmem:[#allocation7 + $0x10c] sm:$0xf]
          %v341 = vld [vmem:[#allocation7 + $0x110] sm:$0xf]
          %v342 = vld [vmem:[#allocation7 + $0x114] sm:$0xf]
          %v343 = vld [vmem:[#allocation7 + $0x118] sm:$0xf]
          %v344 = vld [vmem:[#allocation7 + $0x11c] sm:$0xf]
          %v345 = vld [vmem:[#allocation7 + $0x120] sm:$0xf]
          %v346 = vld [vmem:[#allocation7 + $0x124] sm:$0xf]
          %v347 = vld [vmem:[#allocation7 + $0x128] sm:$0xf]
          %v348 = vld [vmem:[#allocation7 + $0x12c] sm:$0xf]
          %v349 = vld [vmem:[#allocation7 + $0x130] sm:$0xf]
          %v350 = vld [vmem:[#allocation7 + $0x134] sm:$0xf]
          %v351 = vld [vmem:[#allocation7 + $0x138] sm:$0xf]
          %v352 = vld [vmem:[#allocation7 + $0x13c] sm:$0xf]
          %v353 = vld [vmem:[#allocation7 + $0x140] sm:$0xf]
          %v354 = vld [vmem:[#allocation7 + $0x144] sm:$0xf]
          %v355 = vld [vmem:[#allocation7 + $0x148] sm:$0xf]
          %v356 = vld [vmem:[#allocation7 + $0x14c] sm:$0xf]
          %v357 = vld [vmem:[#allocation7 + $0x150] sm:$0xf]
          %v358 = vld [vmem:[#allocation7 + $0x154] sm:$0xf]
          %v359 = vld [vmem:[#allocation7 + $0x158] sm:$0xf]
          %v360 = vld [vmem:[#allocation7 + $0x15c] sm:$0xf]
          %v361 = vld [vmem:[#allocation7 + $0x160] sm:$0xf]
          %v362 = vld [vmem:[#allocation7 + $0x164] sm:$0xf]
          %v363 = vld [vmem:[#allocation7 + $0x168] sm:$0xf]
          %v364 = vld [vmem:[#allocation7 + $0x16c] sm:$0xf]
          %v365 = vld [vmem:[#allocation7 + $0x170] sm:$0xf]
          %v366 = vld [vmem:[#allocation7 + $0x174] sm:$0xf]
          %v367 = vld [vmem:[#allocation7 + $0x178] sm:$0xf]
          %v368 = vld [vmem:[#allocation7 + $0x17c] sm:$0xf]
          %v369 = vld [vmem:[#allocation7 + $0x180] sm:$0xf]
          %v370 = vld [vmem:[#allocation7 + $0x184] sm:$0xf]
          %v371 = vld [vmem:[#allocation7 + $0x188] sm:$0xf]
          %v372 = vld [vmem:[#allocation7 + $0x18c] sm:$0xf]
          %v373 = vld [vmem:[#allocation7 + $0x190] sm:$0xf]
          %v374 = vld [vmem:[#allocation7 + $0x194] sm:$0xf]
          %v375 = vld [vmem:[#allocation7 + $0x198] sm:$0xf]
          %v376 = vld [vmem:[#allocation7 + $0x19c] sm:$0xf]
          %v377 = vld [vmem:[#allocation7 + $0x1a0] sm:$0xf]
          %v378 = vld [vmem:[#allocation7 + $0x1a4] sm:$0xf]
          %v379 = vld [vmem:[#allocation7 + $0x1a8] sm:$0xf]
          %v380 = vld [vmem:[#allocation7 + $0x1ac] sm:$0xf]
          %v381 = vld [vmem:[#allocation7 + $0x1b0] sm:$0xf]
          %v382 = vld [vmem:[#allocation7 + $0x1b4] sm:$0xf]
          %v383 = vld [vmem:[#allocation7 + $0x1b8] sm:$0xf]
          %v384 = vld [vmem:[#allocation7 + $0x1bc] sm:$0xf]
          %v385 = vld [vmem:[#allocation7 + $0x1c0] sm:$0xf]
          %v386 = vld [vmem:[#allocation7 + $0x1c4] sm:$0xf]
          %v387 = vld [vmem:[#allocation7 + $0x1c8] sm:$0xf]
          %v388 = vld [vmem:[#allocation7 + $0x1cc] sm:$0xf]
          %v389 = vld [vmem:[#allocation7 + $0x1d0] sm:$0xf]
          %v390 = vld [vmem:[#allocation7 + $0x1d4] sm:$0xf]
          %v391 = vld [vmem:[#allocation7 + $0x1d8] sm:$0xf]
          %v392 = vld [vmem:[#allocation7 + $0x1dc] sm:$0xf]
          %v393 = vld [vmem:[#allocation7 + $0x1e0] sm:$0xf]
          %v394 = vld [vmem:[#allocation7 + $0x1e4] sm:$0xf]
          %v395 = vld [vmem:[#allocation7 + $0x1e8] sm:$0xf]
          %v396 = vld [vmem:[#allocation7 + $0x1ec] sm:$0xf]
          %v397 = vld [vmem:[#allocation7 + $0x1f0] sm:$0xf]
          %v398 = vld [vmem:[#allocation7 + $0x1f4] sm:$0xf]
          %v399 = vld [vmem:[#allocation7 + $0x1f8] sm:$0xf]
          %v400 = vld [vmem:[#allocation7 + $0x1fc] sm:$0xf]
          %v529 = vunpack.c.l.b16 %v145
          %v530 = vunpack.c.h.b16 %v145
          %v531 = vunpack.c.l.b16 %v146
          %v532 = vunpack.c.h.b16 %v146
          %v533 = vunpack.c.l.b16 %v147
          %v534 = vunpack.c.h.b16 %v147
          %v535 = vunpack.c.l.b16 %v148
          %v536 = vunpack.c.h.b16 %v148
          %v537 = vunpack.c.l.b16 %v149
          %v538 = vunpack.c.h.b16 %v149
          %v539 = vunpack.c.l.b16 %v150
          %v540 = vunpack.c.h.b16 %v150
          %v541 = vunpack.c.l.b16 %v151
          %v542 = vunpack.c.h.b16 %v151
          %v543 = vunpack.c.l.b16 %v152
          %v544 = vunpack.c.h.b16 %v152
          %v545 = vunpack.c.l.b16 %v153
          %v546 = vunpack.c.h.b16 %v153
          %v547 = vunpack.c.l.b16 %v154
          %v548 = vunpack.c.h.b16 %v154
          %v549 = vunpack.c.l.b16 %v155
          %v550 = vunpack.c.h.b16 %v155
          %v551 = vunpack.c.l.b16 %v156
          %v552 = vunpack.c.h.b16 %v156
          %v553 = vunpack.c.l.b16 %v157
          %v554 = vunpack.c.h.b16 %v157
          %v555 = vunpack.c.l.b16 %v158
          %v556 = vunpack.c.h.b16 %v158
          %v557 = vunpack.c.l.b16 %v159
          %v558 = vunpack.c.h.b16 %v159
          %v559 = vunpack.c.l.b16 %v160
          %v560 = vunpack.c.h.b16 %v160
          %v561 = vunpack.c.l.b16 %v161
          %v562 = vunpack.c.h.b16 %v161
          %v563 = vunpack.c.l.b16 %v162
          %v564 = vunpack.c.h.b16 %v162
          %v565 = vunpack.c.l.b16 %v163
          %v566 = vunpack.c.h.b16 %v163
          %v567 = vunpack.c.l.b16 %v164
          %v568 = vunpack.c.h.b16 %v164
          %v569 = vunpack.c.l.b16 %v165
          %v570 = vunpack.c.h.b16 %v165
          %v571 = vunpack.c.l.b16 %v166
          %v572 = vunpack.c.h.b16 %v166
          %v573 = vunpack.c.l.b16 %v167
          %v574 = vunpack.c.h.b16 %v167
          %v575 = vunpack.c.l.b16 %v168
          %v576 = vunpack.c.h.b16 %v168
          %v577 = vunpack.c.l.b16 %v169
          %v578 = vunpack.c.h.b16 %v169
          %v579 = vunpack.c.l.b16 %v170
          %v580 = vunpack.c.h.b16 %v170
          %v581 = vunpack.c.l.b16 %v171
          %v582 = vunpack.c.h.b16 %v171
          %v583 = vunpack.c.l.b16 %v172
          %v584 = vunpack.c.h.b16 %v172
          %v585 = vunpack.c.l.b16 %v173
          %v586 = vunpack.c.h.b16 %v173
          %v587 = vunpack.c.l.b16 %v174
          %v588 = vunpack.c.h.b16 %v174
          %v589 = vunpack.c.l.b16 %v175
          %v590 = vunpack.c.h.b16 %v175
          %v591 = vunpack.c.l.b16 %v176
          %v592 = vunpack.c.h.b16 %v176
          %v593 = vunpack.c.l.b16 %v177
          %v594 = vunpack.c.h.b16 %v177
          %v595 = vunpack.c.l.b16 %v178
          %v596 = vunpack.c.h.b16 %v178
          %v597 = vunpack.c.l.b16 %v179
          %v598 = vunpack.c.h.b16 %v179
          %v599 = vunpack.c.l.b16 %v180
          %v600 = vunpack.c.h.b16 %v180
          %v601 = vunpack.c.l.b16 %v181
          %v602 = vunpack.c.h.b16 %v181
          %v603 = vunpack.c.l.b16 %v182
          %v604 = vunpack.c.h.b16 %v182
          %v605 = vunpack.c.l.b16 %v183
          %v606 = vunpack.c.h.b16 %v183
          %v607 = vunpack.c.l.b16 %v184
          %v608 = vunpack.c.h.b16 %v184
          %v609 = vunpack.c.l.b16 %v185
          %v610 = vunpack.c.h.b16 %v185
          %v611 = vunpack.c.l.b16 %v186
          %v612 = vunpack.c.h.b16 %v186
          %v613 = vunpack.c.l.b16 %v187
          %v614 = vunpack.c.h.b16 %v187
          %v615 = vunpack.c.l.b16 %v188
          %v616 = vunpack.c.h.b16 %v188
          %v617 = vunpack.c.l.b16 %v189
          %v618 = vunpack.c.h.b16 %v189
          %v619 = vunpack.c.l.b16 %v190
          %v620 = vunpack.c.h.b16 %v190
          %v621 = vunpack.c.l.b16 %v191
          %v622 = vunpack.c.h.b16 %v191
          %v623 = vunpack.c.l.b16 %v192
          %v624 = vunpack.c.h.b16 %v192
          %v625 = vunpack.c.l.b16 %v193
          %v626 = vunpack.c.h.b16 %v193
          %v627 = vunpack.c.l.b16 %v194
          %v628 = vunpack.c.h.b16 %v194
          %v629 = vunpack.c.l.b16 %v195
          %v630 = vunpack.c.h.b16 %v195
          %v631 = vunpack.c.l.b16 %v196
          %v632 = vunpack.c.h.b16 %v196
          %v633 = vunpack.c.l.b16 %v197
          %v634 = vunpack.c.h.b16 %v197
          %v635 = vunpack.c.l.b16 %v198
          %v636 = vunpack.c.h.b16 %v198
          %v637 = vunpack.c.l.b16 %v199
          %v638 = vunpack.c.h.b16 %v199
          %v639 = vunpack.c.l.b16 %v200
          %v640 = vunpack.c.h.b16 %v200
          %v641 = vunpack.c.l.b16 %v201
          %v642 = vunpack.c.h.b16 %v201
          %v643 = vunpack.c.l.b16 %v202
          %v644 = vunpack.c.h.b16 %v202
          %v645 = vunpack.c.l.b16 %v203
          %v646 = vunpack.c.h.b16 %v203
          %v647 = vunpack.c.l.b16 %v204
          %v648 = vunpack.c.h.b16 %v204
          %v649 = vunpack.c.l.b16 %v205
          %v650 = vunpack.c.h.b16 %v205
          %v651 = vunpack.c.l.b16 %v206
          %v652 = vunpack.c.h.b16 %v206
          %v653 = vunpack.c.l.b16 %v207
          %v654 = vunpack.c.h.b16 %v207
          %v655 = vunpack.c.l.b16 %v208
          %v656 = vunpack.c.h.b16 %v208
          %v657 = vunpack.c.l.b16 %v209
          %v658 = vunpack.c.h.b16 %v209
          %v659 = vunpack.c.l.b16 %v210
          %v660 = vunpack.c.h.b16 %v210
          %v661 = vunpack.c.l.b16 %v211
          %v662 = vunpack.c.h.b16 %v211
          %v663 = vunpack.c.l.b16 %v212
          %v664 = vunpack.c.h.b16 %v212
          %v665 = vunpack.c.l.b16 %v213
          %v666 = vunpack.c.h.b16 %v213
          %v667 = vunpack.c.l.b16 %v214
          %v668 = vunpack.c.h.b16 %v214
          %v669 = vunpack.c.l.b16 %v215
          %v670 = vunpack.c.h.b16 %v215
          %v671 = vunpack.c.l.b16 %v216
          %v672 = vunpack.c.h.b16 %v216
          %v673 = vunpack.c.l.b16 %v217
          %v674 = vunpack.c.h.b16 %v217
          %v675 = vunpack.c.l.b16 %v218
          %v676 = vunpack.c.h.b16 %v218
          %v677 = vunpack.c.l.b16 %v219
          %v678 = vunpack.c.h.b16 %v219
          %v679 = vunpack.c.l.b16 %v220
          %v680 = vunpack.c.h.b16 %v220
          %v681 = vunpack.c.l.b16 %v221
          %v682 = vunpack.c.h.b16 %v221
          %v683 = vunpack.c.l.b16 %v222
          %v684 = vunpack.c.h.b16 %v222
          %v685 = vunpack.c.l.b16 %v223
          %v686 = vunpack.c.h.b16 %v223
          %v687 = vunpack.c.l.b16 %v224
          %v688 = vunpack.c.h.b16 %v224
          %v689 = vunpack.c.l.b16 %v225
          %v690 = vunpack.c.h.b16 %v225
          %v691 = vunpack.c.l.b16 %v226
          %v692 = vunpack.c.h.b16 %v226
          %v693 = vunpack.c.l.b16 %v227
          %v694 = vunpack.c.h.b16 %v227
          %v695 = vunpack.c.l.b16 %v228
          %v696 = vunpack.c.h.b16 %v228
          %v697 = vunpack.c.l.b16 %v229
          %v698 = vunpack.c.h.b16 %v229
          %v699 = vunpack.c.l.b16 %v230
          %v700 = vunpack.c.h.b16 %v230
          %v701 = vunpack.c.l.b16 %v231
          %v702 = vunpack.c.h.b16 %v231
          %v703 = vunpack.c.l.b16 %v232
          %v704 = vunpack.c.h.b16 %v232
          %v705 = vunpack.c.l.b16 %v233
          %v706 = vunpack.c.h.b16 %v233
          %v707 = vunpack.c.l.b16 %v234
          %v708 = vunpack.c.h.b16 %v234
          %v709 = vunpack.c.l.b16 %v235
          %v710 = vunpack.c.h.b16 %v235
          %v711 = vunpack.c.l.b16 %v236
          %v712 = vunpack.c.h.b16 %v236
          %v713 = vunpack.c.l.b16 %v237
          %v714 = vunpack.c.h.b16 %v237
          %v715 = vunpack.c.l.b16 %v238
          %v716 = vunpack.c.h.b16 %v238
          %v717 = vunpack.c.l.b16 %v239
          %v718 = vunpack.c.h.b16 %v239
          %v719 = vunpack.c.l.b16 %v240
          %v720 = vunpack.c.h.b16 %v240
          %v721 = vunpack.c.l.b16 %v241
          %v722 = vunpack.c.h.b16 %v241
          %v723 = vunpack.c.l.b16 %v242
          %v724 = vunpack.c.h.b16 %v242
          %v725 = vunpack.c.l.b16 %v243
          %v726 = vunpack.c.h.b16 %v243
          %v727 = vunpack.c.l.b16 %v244
          %v728 = vunpack.c.h.b16 %v244
          %v729 = vunpack.c.l.b16 %v245
          %v730 = vunpack.c.h.b16 %v245
          %v731 = vunpack.c.l.b16 %v246
          %v732 = vunpack.c.h.b16 %v246
          %v733 = vunpack.c.l.b16 %v247
          %v734 = vunpack.c.h.b16 %v247
          %v735 = vunpack.c.l.b16 %v248
          %v736 = vunpack.c.h.b16 %v248
          %v737 = vunpack.c.l.b16 %v249
          %v738 = vunpack.c.h.b16 %v249
          %v739 = vunpack.c.l.b16 %v250
          %v740 = vunpack.c.h.b16 %v250
          %v741 = vunpack.c.l.b16 %v251
          %v742 = vunpack.c.h.b16 %v251
          %v743 = vunpack.c.l.b16 %v252
          %v744 = vunpack.c.h.b16 %v252
          %v745 = vunpack.c.l.b16 %v253
          %v746 = vunpack.c.h.b16 %v253
          %v747 = vunpack.c.l.b16 %v254
          %v748 = vunpack.c.h.b16 %v254
          %v749 = vunpack.c.l.b16 %v255
          %v750 = vunpack.c.h.b16 %v255
          %v751 = vunpack.c.l.b16 %v256
          %v752 = vunpack.c.h.b16 %v256
          %v753 = vunpack.c.l.b16 %v257
          %v754 = vunpack.c.h.b16 %v257
          %v755 = vunpack.c.l.b16 %v258
          %v756 = vunpack.c.h.b16 %v258
          %v757 = vunpack.c.l.b16 %v259
          %v758 = vunpack.c.h.b16 %v259
          %v759 = vunpack.c.l.b16 %v260
          %v760 = vunpack.c.h.b16 %v260
          %v761 = vunpack.c.l.b16 %v261
          %v762 = vunpack.c.h.b16 %v261
          %v763 = vunpack.c.l.b16 %v262
          %v764 = vunpack.c.h.b16 %v262
          %v765 = vunpack.c.l.b16 %v263
          %v766 = vunpack.c.h.b16 %v263
          %v767 = vunpack.c.l.b16 %v264
          %v768 = vunpack.c.h.b16 %v264
          %v769 = vunpack.c.l.b16 %v265
          %v770 = vunpack.c.h.b16 %v265
          %v771 = vunpack.c.l.b16 %v266
          %v772 = vunpack.c.h.b16 %v266
          %v773 = vunpack.c.l.b16 %v267
          %v774 = vunpack.c.h.b16 %v267
          %v775 = vunpack.c.l.b16 %v268
          %v776 = vunpack.c.h.b16 %v268
          %v777 = vunpack.c.l.b16 %v269
          %v778 = vunpack.c.h.b16 %v269
          %v779 = vunpack.c.l.b16 %v270
          %v780 = vunpack.c.h.b16 %v270
          %v781 = vunpack.c.l.b16 %v271
          %v782 = vunpack.c.h.b16 %v271
          %v783 = vunpack.c.l.b16 %v272
          %v784 = vunpack.c.h.b16 %v272
          %v785 = vpack.c.b16 %v537, %v529
          %v786 = vpack.c.b16 %v538, %v530
          %v787 = vpack.c.b16 %v539, %v531
          %v788 = vpack.c.b16 %v540, %v532
          %v789 = vpack.c.b16 %v541, %v533
          %v790 = vpack.c.b16 %v542, %v534
          %v791 = vpack.c.b16 %v543, %v535
          %v792 = vpack.c.b16 %v544, %v536
          %v793 = vpack.c.b16 %v553, %v545
          %v794 = vpack.c.b16 %v554, %v546
          %v795 = vpack.c.b16 %v555, %v547
          %v796 = vpack.c.b16 %v556, %v548
          %v797 = vpack.c.b16 %v557, %v549
          %v798 = vpack.c.b16 %v558, %v550
          %v799 = vpack.c.b16 %v559, %v551
          %v800 = vpack.c.b16 %v560, %v552
          %v801 = vpack.c.b16 %v569, %v561
          %v802 = vpack.c.b16 %v570, %v562
          %v803 = vpack.c.b16 %v571, %v563
          %v804 = vpack.c.b16 %v572, %v564
          %v805 = vpack.c.b16 %v573, %v565
          %v806 = vpack.c.b16 %v574, %v566
          %v807 = vpack.c.b16 %v575, %v567
          %v808 = vpack.c.b16 %v576, %v568
          %v809 = vpack.c.b16 %v585, %v577
          %v810 = vpack.c.b16 %v586, %v578
          %v811 = vpack.c.b16 %v587, %v579
          %v812 = vpack.c.b16 %v588, %v580
          %v813 = vpack.c.b16 %v589, %v581
          %v814 = vpack.c.b16 %v590, %v582
          %v815 = vpack.c.b16 %v591, %v583
          %v816 = vpack.c.b16 %v592, %v584
          %v817 = vpack.c.b16 %v601, %v593
          %v818 = vpack.c.b16 %v602, %v594
          %v819 = vpack.c.b16 %v603, %v595
          %v820 = vpack.c.b16 %v604, %v596
          %v821 = vpack.c.b16 %v605, %v597
          %v822 = vpack.c.b16 %v606, %v598
          %v823 = vpack.c.b16 %v607, %v599
          %v824 = vpack.c.b16 %v608, %v600
          %v825 = vpack.c.b16 %v617, %v609
          %v826 = vpack.c.b16 %v618, %v610
          %v827 = vpack.c.b16 %v619, %v611
          %v828 = vpack.c.b16 %v620, %v612
          %v829 = vpack.c.b16 %v621, %v613
          %v830 = vpack.c.b16 %v622, %v614
          %v831 = vpack.c.b16 %v623, %v615
          %v832 = vpack.c.b16 %v624, %v616
          %v833 = vpack.c.b16 %v633, %v625
          %v834 = vpack.c.b16 %v634, %v626
          %v835 = vpack.c.b16 %v635, %v627
          %v836 = vpack.c.b16 %v636, %v628
          %v837 = vpack.c.b16 %v637, %v629
          %v838 = vpack.c.b16 %v638, %v630
          %v839 = vpack.c.b16 %v639, %v631
          %v840 = vpack.c.b16 %v640, %v632
          %v841 = vpack.c.b16 %v649, %v641
          %v842 = vpack.c.b16 %v650, %v642
          %v843 = vpack.c.b16 %v651, %v643
          %v844 = vpack.c.b16 %v652, %v644
          %v845 = vpack.c.b16 %v653, %v645
          %v846 = vpack.c.b16 %v654, %v646
          %v847 = vpack.c.b16 %v655, %v647
          %v848 = vpack.c.b16 %v656, %v648
          %v849 = vpack.c.b16 %v665, %v657
          %v850 = vpack.c.b16 %v666, %v658
          %v851 = vpack.c.b16 %v667, %v659
          %v852 = vpack.c.b16 %v668, %v660
          %v853 = vpack.c.b16 %v669, %v661
          %v854 = vpack.c.b16 %v670, %v662
          %v855 = vpack.c.b16 %v671, %v663
          %v856 = vpack.c.b16 %v672, %v664
          %v857 = vpack.c.b16 %v681, %v673
          %v858 = vpack.c.b16 %v682, %v674
          %v859 = vpack.c.b16 %v683, %v675
          %v860 = vpack.c.b16 %v684, %v676
          %v861 = vpack.c.b16 %v685, %v677
          %v862 = vpack.c.b16 %v686, %v678
          %v863 = vpack.c.b16 %v687, %v679
          %v864 = vpack.c.b16 %v688, %v680
          %v865 = vpack.c.b16 %v697, %v689
          %v866 = vpack.c.b16 %v698, %v690
          %v867 = vpack.c.b16 %v699, %v691
          %v868 = vpack.c.b16 %v700, %v692
          %v869 = vpack.c.b16 %v701, %v693
          %v870 = vpack.c.b16 %v702, %v694
          %v871 = vpack.c.b16 %v703, %v695
          %v872 = vpack.c.b16 %v704, %v696
          %v873 = vpack.c.b16 %v713, %v705
          %v874 = vpack.c.b16 %v714, %v706
          %v875 = vpack.c.b16 %v715, %v707
          %v876 = vpack.c.b16 %v716, %v708
          %v877 = vpack.c.b16 %v717, %v709
          %v878 = vpack.c.b16 %v718, %v710
          %v879 = vpack.c.b16 %v719, %v711
          %v880 = vpack.c.b16 %v720, %v712
          %v881 = vpack.c.b16 %v729, %v721
          %v882 = vpack.c.b16 %v730, %v722
          %v883 = vpack.c.b16 %v731, %v723
          %v884 = vpack.c.b16 %v732, %v724
          %v885 = vpack.c.b16 %v733, %v725
          %v886 = vpack.c.b16 %v734, %v726
          %v887 = vpack.c.b16 %v735, %v727
          %v888 = vpack.c.b16 %v736, %v728
          %v889 = vpack.c.b16 %v745, %v737
          %v890 = vpack.c.b16 %v746, %v738
          %v891 = vpack.c.b16 %v747, %v739
          %v892 = vpack.c.b16 %v748, %v740
          %v893 = vpack.c.b16 %v749, %v741
          %v894 = vpack.c.b16 %v750, %v742
          %v895 = vpack.c.b16 %v751, %v743
          %v896 = vpack.c.b16 %v752, %v744
          %v897 = vpack.c.b16 %v761, %v753
          %v898 = vpack.c.b16 %v762, %v754
          %v899 = vpack.c.b16 %v763, %v755
          %v900 = vpack.c.b16 %v764, %v756
          %v901 = vpack.c.b16 %v765, %v757
          %v902 = vpack.c.b16 %v766, %v758
          %v903 = vpack.c.b16 %v767, %v759
          %v904 = vpack.c.b16 %v768, %v760
          %v905 = vpack.c.b16 %v777, %v769
          %v906 = vpack.c.b16 %v778, %v770
          %v907 = vpack.c.b16 %v779, %v771
          %v908 = vpack.c.b16 %v780, %v772
          %v909 = vpack.c.b16 %v781, %v773
          %v910 = vpack.c.b16 %v782, %v774
          %v911 = vpack.c.b16 %v783, %v775
          %v912 = vpack.c.b16 %v784, %v776
          %v1169 = vunpack.c.l.b16 %v273
          %v1170 = vunpack.c.l.b16 %v274
          %v1171 = vunpack.c.l.b16 %v275
          %v1172 = vunpack.c.l.b16 %v276
          %v1173 = vunpack.c.l.b16 %v277
          %v1174 = vunpack.c.l.b16 %v278
          %v1175 = vunpack.c.l.b16 %v279
          %v1176 = vunpack.c.l.b16 %v280
          %v1177 = vunpack.c.l.b16 %v281
          %v1178 = vunpack.c.l.b16 %v282
          %v1179 = vunpack.c.l.b16 %v283
          %v1180 = vunpack.c.l.b16 %v284
          %v1181 = vunpack.c.l.b16 %v285
          %v1182 = vunpack.c.l.b16 %v286
          %v1183 = vunpack.c.l.b16 %v287
          %v1184 = vunpack.c.l.b16 %v288
          %v1185 = vunpack.c.l.b16 %v289
          %v1186 = vunpack.c.l.b16 %v290
          %v1187 = vunpack.c.l.b16 %v291
          %v1188 = vunpack.c.l.b16 %v292
          %v1189 = vunpack.c.l.b16 %v293
          %v1190 = vunpack.c.l.b16 %v294
          %v1191 = vunpack.c.l.b16 %v295
          %v1192 = vunpack.c.l.b16 %v296
          %v1193 = vunpack.c.l.b16 %v297
          %v1194 = vunpack.c.l.b16 %v298
          %v1195 = vunpack.c.l.b16 %v299
          %v1196 = vunpack.c.l.b16 %v300
          %v1197 = vunpack.c.l.b16 %v301
          %v1198 = vunpack.c.l.b16 %v302
          %v1199 = vunpack.c.l.b16 %v303
          %v1200 = vunpack.c.l.b16 %v304
          %v1201 = vunpack.c.l.b16 %v305
          %v1202 = vunpack.c.l.b16 %v306
          %v1203 = vunpack.c.l.b16 %v307
          %v1204 = vunpack.c.l.b16 %v308
          %v1205 = vunpack.c.l.b16 %v309
          %v1206 = vunpack.c.l.b16 %v310
          %v1207 = vunpack.c.l.b16 %v311
          %v1208 = vunpack.c.l.b16 %v312
          %v1209 = vunpack.c.l.b16 %v313
          %v1210 = vunpack.c.l.b16 %v314
          %v1211 = vunpack.c.l.b16 %v315
          %v1212 = vunpack.c.l.b16 %v316
          %v1213 = vunpack.c.l.b16 %v317
          %v1214 = vunpack.c.l.b16 %v318
          %v1215 = vunpack.c.l.b16 %v319
          %v1216 = vunpack.c.l.b16 %v320
          %v1217 = vunpack.c.l.b16 %v321
          %v1218 = vunpack.c.l.b16 %v322
          %v1219 = vunpack.c.l.b16 %v323
          %v1220 = vunpack.c.l.b16 %v324
          %v1221 = vunpack.c.l.b16 %v325
          %v1222 = vunpack.c.l.b16 %v326
          %v1223 = vunpack.c.l.b16 %v327
          %v1224 = vunpack.c.l.b16 %v328
          %v1225 = vunpack.c.l.b16 %v329
          %v1226 = vunpack.c.l.b16 %v330
          %v1227 = vunpack.c.l.b16 %v331
          %v1228 = vunpack.c.l.b16 %v332
          %v1229 = vunpack.c.l.b16 %v333
          %v1230 = vunpack.c.l.b16 %v334
          %v1231 = vunpack.c.l.b16 %v335
          %v1232 = vunpack.c.l.b16 %v336
          %v1233 = vunpack.c.l.b16 %v337
          %v1234 = vunpack.c.l.b16 %v338
          %v1235 = vunpack.c.l.b16 %v339
          %v1236 = vunpack.c.l.b16 %v340
          %v1237 = vunpack.c.l.b16 %v341
          %v1238 = vunpack.c.l.b16 %v342
          %v1239 = vunpack.c.l.b16 %v343
          %v1240 = vunpack.c.l.b16 %v344
          %v1241 = vunpack.c.l.b16 %v345
          %v1242 = vunpack.c.l.b16 %v346
          %v1243 = vunpack.c.l.b16 %v347
          %v1244 = vunpack.c.l.b16 %v348
          %v1245 = vunpack.c.l.b16 %v349
          %v1246 = vunpack.c.l.b16 %v350
          %v1247 = vunpack.c.l.b16 %v351
          %v1248 = vunpack.c.l.b16 %v352
          %v1249 = vunpack.c.l.b16 %v353
          %v1250 = vunpack.c.l.b16 %v354
          %v1251 = vunpack.c.l.b16 %v355
          %v1252 = vunpack.c.l.b16 %v356
          %v1253 = vunpack.c.l.b16 %v357
          %v1254 = vunpack.c.l.b16 %v358
          %v1255 = vunpack.c.l.b16 %v359
          %v1256 = vunpack.c.l.b16 %v360
          %v1257 = vunpack.c.l.b16 %v361
          %v1258 = vunpack.c.l.b16 %v362
          %v1259 = vunpack.c.l.b16 %v363
          %v1260 = vunpack.c.l.b16 %v364
          %v1261 = vunpack.c.l.b16 %v365
          %v1262 = vunpack.c.l.b16 %v366
          %v1263 = vunpack.c.l.b16 %v367
          %v1264 = vunpack.c.l.b16 %v368
          %v1265 = vunpack.c.l.b16 %v369
          %v1266 = vunpack.c.l.b16 %v370
          %v1267 = vunpack.c.l.b16 %v371
          %v1268 = vunpack.c.l.b16 %v372
          %v1269 = vunpack.c.l.b16 %v373
          %v1270 = vunpack.c.l.b16 %v374
          %v1271 = vunpack.c.l.b16 %v375
          %v1272 = vunpack.c.l.b16 %v376
          %v1273 = vunpack.c.l.b16 %v377
          %v1274 = vunpack.c.l.b16 %v378
          %v1275 = vunpack.c.l.b16 %v379
          %v1276 = vunpack.c.l.b16 %v380
          %v1277 = vunpack.c.l.b16 %v381
          %v1278 = vunpack.c.l.b16 %v382
          %v1279 = vunpack.c.l.b16 %v383
          %v1280 = vunpack.c.l.b16 %v384
          %v1281 = vunpack.c.l.b16 %v385
          %v1282 = vunpack.c.l.b16 %v386
          %v1283 = vunpack.c.l.b16 %v387
          %v1284 = vunpack.c.l.b16 %v388
          %v1285 = vunpack.c.l.b16 %v389
          %v1286 = vunpack.c.l.b16 %v390
          %v1287 = vunpack.c.l.b16 %v391
          %v1288 = vunpack.c.l.b16 %v392
          %v1289 = vunpack.c.l.b16 %v393
          %v1290 = vunpack.c.l.b16 %v394
          %v1291 = vunpack.c.l.b16 %v395
          %v1292 = vunpack.c.l.b16 %v396
          %v1293 = vunpack.c.l.b16 %v397
          %v1294 = vunpack.c.l.b16 %v398
          %v1295 = vunpack.c.l.b16 %v399
          %v1296 = vunpack.c.l.b16 %v400
          %v1297 = vpack.c.b16 %v1170, %v1169
          %v1298 = vpack.c.b16 %v1172, %v1171
          %v1299 = vpack.c.b16 %v1174, %v1173
          %v1300 = vpack.c.b16 %v1176, %v1175
          %v1301 = vpack.c.b16 %v1178, %v1177
          %v1302 = vpack.c.b16 %v1180, %v1179
          %v1303 = vpack.c.b16 %v1182, %v1181
          %v1304 = vpack.c.b16 %v1184, %v1183
          %v1305 = vpack.c.b16 %v1186, %v1185
          %v1306 = vpack.c.b16 %v1188, %v1187
          %v1307 = vpack.c.b16 %v1190, %v1189
          %v1308 = vpack.c.b16 %v1192, %v1191
          %v1309 = vpack.c.b16 %v1194, %v1193
          %v1310 = vpack.c.b16 %v1196, %v1195
          %v1311 = vpack.c.b16 %v1198, %v1197
          %v1312 = vpack.c.b16 %v1200, %v1199
          %v1313 = vpack.c.b16 %v1202, %v1201
          %v1314 = vpack.c.b16 %v1204, %v1203
          %v1315 = vpack.c.b16 %v1206, %v1205
          %v1316 = vpack.c.b16 %v1208, %v1207
          %v1317 = vpack.c.b16 %v1210, %v1209
          %v1318 = vpack.c.b16 %v1212, %v1211
          %v1319 = vpack.c.b16 %v1214, %v1213
          %v1320 = vpack.c.b16 %v1216, %v1215
          %v1321 = vpack.c.b16 %v1218, %v1217
          %v1322 = vpack.c.b16 %v1220, %v1219
          %v1323 = vpack.c.b16 %v1222, %v1221
          %v1324 = vpack.c.b16 %v1224, %v1223
          %v1325 = vpack.c.b16 %v1226, %v1225
          %v1326 = vpack.c.b16 %v1228, %v1227
          %v1327 = vpack.c.b16 %v1230, %v1229
          %v1328 = vpack.c.b16 %v1232, %v1231
          %v1329 = vpack.c.b16 %v1234, %v1233
          %v1330 = vpack.c.b16 %v1236, %v1235
          %v1331 = vpack.c.b16 %v1238, %v1237
          %v1332 = vpack.c.b16 %v1240, %v1239
          %v1333 = vpack.c.b16 %v1242, %v1241
          %v1334 = vpack.c.b16 %v1244, %v1243
          %v1335 = vpack.c.b16 %v1246, %v1245
          %v1336 = vpack.c.b16 %v1248, %v1247
          %v1337 = vpack.c.b16 %v1250, %v1249
          %v1338 = vpack.c.b16 %v1252, %v1251
          %v1339 = vpack.c.b16 %v1254, %v1253
          %v1340 = vpack.c.b16 %v1256, %v1255
          %v1341 = vpack.c.b16 %v1258, %v1257
          %v1342 = vpack.c.b16 %v1260, %v1259
          %v1343 = vpack.c.b16 %v1262, %v1261
          %v1344 = vpack.c.b16 %v1264, %v1263
          %v1345 = vpack.c.b16 %v1266, %v1265
          %v1346 = vpack.c.b16 %v1268, %v1267
          %v1347 = vpack.c.b16 %v1270, %v1269
          %v1348 = vpack.c.b16 %v1272, %v1271
          %v1349 = vpack.c.b16 %v1274, %v1273
          %v1350 = vpack.c.b16 %v1276, %v1275
          %v1351 = vpack.c.b16 %v1278, %v1277
          %v1352 = vpack.c.b16 %v1280, %v1279
          %v1353 = vpack.c.b16 %v1282, %v1281
          %v1354 = vpack.c.b16 %v1284, %v1283
          %v1355 = vpack.c.b16 %v1286, %v1285
          %v1356 = vpack.c.b16 %v1288, %v1287
          %v1357 = vpack.c.b16 %v1290, %v1289
          %v1358 = vpack.c.b16 %v1292, %v1291
          %v1359 = vpack.c.b16 %v1294, %v1293
          %v1360 = vpack.c.b16 %v1296, %v1295
          %1425 = vmatprep.subr.bf16.mxu0 0
          %1426 = vmatpush1.bf16.msra.mxu0 %v1297
          %1427 = vmatprep.subr.bf16.mxu0 0
          %1428 = vmatpush1.bf16.msra.mxu0 %v1298
          %1429 = vmatprep.subr.bf16.mxu0 0
          %1430 = vmatpush1.bf16.msra.mxu0 %v1299
          %1431 = vmatprep.subr.bf16.mxu0 0
          %1432 = vmatpush1.bf16.msra.mxu0 %v1300
          %1433 = vmatprep.subr.bf16.mxu0 0
          %1434 = vmatpush1.bf16.msra.mxu0 %v1301
          %1435 = vmatprep.subr.bf16.mxu0 0
          %1436 = vmatpush1.bf16.msra.mxu0 %v1302
          %1437 = vmatprep.subr.bf16.mxu0 0
          %1438 = vmatpush1.bf16.msra.mxu0 %v1303
          %1439 = vmatprep.subr.bf16.mxu0 0
          %1440 = vmatpush1.bf16.msra.mxu0 %v1304
          %1441 = vmatprep.subr.bf16.mxu0 0
          %1442 = vmatpush1.bf16.msra.mxu0 %v1305
          %1443 = vmatprep.subr.bf16.mxu0 0
          %1444 = vmatpush1.bf16.msra.mxu0 %v1306
          %1445 = vmatprep.subr.bf16.mxu0 0
          %1446 = vmatpush1.bf16.msra.mxu0 %v1307
          %1447 = vmatprep.subr.bf16.mxu0 0
          %1448 = vmatpush1.bf16.msra.mxu0 %v1308
          %1449 = vmatprep.subr.bf16.mxu0 0
          %1450 = vmatpush1.bf16.msra.mxu0 %v1309
          %1451 = vmatprep.subr.bf16.mxu0 0
          %1452 = vmatpush1.bf16.msra.mxu0 %v1310
          %1453 = vmatprep.subr.bf16.mxu0 0
          %1454 = vmatpush1.bf16.msra.mxu0 %v1311
          %1455 = vmatprep.subr.bf16.mxu0 0
          %1456 = vmatpush1.bf16.msra.mxu0 %v1312
          %1457 = vmatprep.mubr.bf16.mxu0 %v786
          %1458 = vmatmul.mubr.bf16.gmra.mrb[0].mxu0 %v785
          %v1459 = vpop.f32.mrb[0].mxu0
          %v1460 = vadd.f32 0.0, %v1459
          %v1461 = vpop.f32.mrb[0].mxu0
          %v1462 = vpop.f32.mrb[0].mxu0
          %v1463 = vadd.f32 0.0, %v1462
          %v1464 = vpop.f32.mrb[0].mxu0
          %1465 = vmatprep.mubr.bf16.mxu0 %v794
          %1466 = vmatmul.mubr.bf16.gmra.mrb[0].mxu0 %v793
          %v1467 = vpop.f32.mrb[0].mxu0
          %v1468 = vadd.f32 0.0, %v1467
          %v1469 = vpop.f32.mrb[0].mxu0
          %v1470 = vpop.f32.mrb[0].mxu0
          %v1471 = vadd.f32 0.0, %v1470
          %v1472 = vpop.f32.mrb[0].mxu0
          %1473 = vmatprep.mubr.bf16.mxu0 %v802
          %1474 = vmatmul.mubr.bf16.gmra.mrb[0].mxu0 %v801
          %v1475 = vpop.f32.mrb[0].mxu0
          %v1476 = vadd.f32 0.0, %v1475
          %v1477 = vpop.f32.mrb[0].mxu0
          %v1478 = vpop.f32.mrb[0].mxu0
          %v1479 = vadd.f32 0.0, %v1478
          %v1480 = vpop.f32.mrb[0].mxu0
          %1481 = vmatprep.mubr.bf16.mxu0 %v810
          %1482 = vmatmul.mubr.bf16.gmra.mrb[0].mxu0 %v809
          %v1483 = vpop.f32.mrb[0].mxu0
          %v1484 = vadd.f32 0.0, %v1483
          %v1485 = vpop.f32.mrb[0].mxu0
          %v1486 = vpop.f32.mrb[0].mxu0
          %v1487 = vadd.f32 0.0, %v1486
          %v1488 = vpop.f32.mrb[0].mxu0
          %1489 = vmatprep.mubr.bf16.mxu0 %v818
          %1490 = vmatmul.mubr.bf16.gmra.mrb[0].mxu0 %v817
          %v1491 = vpop.f32.mrb[0].mxu0
          %v1492 = vadd.f32 0.0, %v1491
          %v1493 = vpop.f32.mrb[0].mxu0
          %v1494 = vpop.f32.mrb[0].mxu0
          %v1495 = vadd.f32 0.0, %v1494
          %v1496 = vpop.f32.mrb[0].mxu0
          %1497 = vmatprep.mubr.bf16.mxu0 %v826
          %1498 = vmatmul.mubr.bf16.gmra.mrb[0].mxu0 %v825
          %v1499 = vpop.f32.mrb[0].mxu0
          %v1500 = vadd.f32 0.0, %v1499
          %v1501 = vpop.f32.mrb[0].mxu0
          %v1502 = vpop.f32.mrb[0].mxu0
          %v1503 = vadd.f32 0.0, %v1502
          %v1504 = vpop.f32.mrb[0].mxu0
          %1505 = vmatprep.mubr.bf16.mxu0 %v834
          %1506 = vmatmul.mubr.bf16.gmra.mrb[0].mxu0 %v833
          %v1507 = vpop.f32.mrb[0].mxu0
          %v1508 = vadd.f32 0.0, %v1507
          %v1509 = vpop.f32.mrb[0].mxu0
          %v1510 = vpop.f32.mrb[0].mxu0
          %v1511 = vadd.f32 0.0, %v1510
          %v1512 = vpop.f32.mrb[0].mxu0
          %1513 = vmatprep.mubr.bf16.mxu0 %v842
          %1514 = vmatmul.mubr.bf16.gmra.mrb[0].mxu0 %v841
          %v1515 = vpop.f32.mrb[0].mxu0
          %v1516 = vadd.f32 0.0, %v1515
          %v1517 = vpop.f32.mrb[0].mxu0
          %v1518 = vpop.f32.mrb[0].mxu0
          %v1519 = vadd.f32 0.0, %v1518
          %v1520 = vpop.f32.mrb[0].mxu0
          %1521 = vmatprep.mubr.bf16.mxu0 %v850
          %1522 = vmatmul.mubr.bf16.gmra.mrb[0].mxu0 %v849
          %v1523 = vpop.f32.mrb[0].mxu0
          %v1524 = vadd.f32 0.0, %v1523
          %v1525 = vpop.f32.mrb[0].mxu0
          %v1526 = vpop.f32.mrb[0].mxu0
          %v1527 = vadd.f32 0.0, %v1526
          %v1528 = vpop.f32.mrb[0].mxu0
          %1529 = vmatprep.mubr.bf16.mxu0 %v858
          %1530 = vmatmul.mubr.bf16.gmra.mrb[0].mxu0 %v857
          %v1531 = vpop.f32.mrb[0].mxu0
          %v1532 = vadd.f32 0.0, %v1531
          %v1533 = vpop.f32.mrb[0].mxu0
          %v1534 = vpop.f32.mrb[0].mxu0
          %v1535 = vadd.f32 0.0, %v1534
          %v1536 = vpop.f32.mrb[0].mxu0
          %1537 = vmatprep.mubr.bf16.mxu0 %v866
          %1538 = vmatmul.mubr.bf16.gmra.mrb[0].mxu0 %v865
          %v1539 = vpop.f32.mrb[0].mxu0
          %v1540 = vadd.f32 0.0, %v1539
          %v1541 = vpop.f32.mrb[0].mxu0
          %v1542 = vpop.f32.mrb[0].mxu0
          %v1543 = vadd.f32 0.0, %v1542
          %v1544 = vpop.f32.mrb[0].mxu0
          %1545 = vmatprep.mubr.bf16.mxu0 %v874
          %1546 = vmatmul.mubr.bf16.gmra.mrb[0].mxu0 %v873
          %v1547 = vpop.f32.mrb[0].mxu0
          %v1548 = vadd.f32 0.0, %v1547
          %v1549 = vpop.f32.mrb[0].mxu0
          %v1550 = vpop.f32.mrb[0].mxu0
          %v1551 = vadd.f32 0.0, %v1550
          %v1552 = vpop.f32.mrb[0].mxu0
          %1553 = vmatprep.mubr.bf16.mxu0 %v882
          %1554 = vmatmul.mubr.bf16.gmra.mrb[0].mxu0 %v881
          %v1555 = vpop.f32.mrb[0].mxu0
          %v1556 = vadd.f32 0.0, %v1555
          %v1557 = vpop.f32.mrb[0].mxu0
          %v1558 = vpop.f32.mrb[0].mxu0
          %v1559 = vadd.f32 0.0, %v1558
          %v1560 = vpop.f32.mrb[0].mxu0
          %1561 = vmatprep.mubr.bf16.mxu0 %v890
          %1562 = vmatmul.mubr.bf16.gmra.mrb[0].mxu0 %v889
          %v1563 = vpop.f32.mrb[0].mxu0
          %v1564 = vadd.f32 0.0, %v1563
          %v1565 = vpop.f32.mrb[0].mxu0
          %v1566 = vpop.f32.mrb[0].mxu0
          %v1567 = vadd.f32 0.0, %v1566
          %v1568 = vpop.f32.mrb[0].mxu0
          %1569 = vmatprep.mubr.bf16.mxu0 %v898
          %1570 = vmatmul.mubr.bf16.gmra.mrb[0].mxu0 %v897
          %v1571 = vpop.f32.mrb[0].mxu0
          %v1572 = vadd.f32 0.0, %v1571
          %v1573 = vpop.f32.mrb[0].mxu0
          %v1574 = vpop.f32.mrb[0].mxu0
          %v1575 = vadd.f32 0.0, %v1574
          %v1576 = vpop.f32.mrb[0].mxu0
          %1577 = vmatprep.mubr.bf16.mxu0 %v906
          %1578 = vmatmul.mubr.bf16.gmra.mrb[0].mxu0 %v905
          %v1579 = vpop.f32.mrb[0].mxu0
          %v1580 = vadd.f32 0.0, %v1579
          %v1581 = vpop.f32.mrb[0].mxu0
          %v1582 = vpop.f32.mrb[0].mxu0
          %v1583 = vadd.f32 0.0, %v1582
          %v1584 = vpop.f32.mrb[0].mxu0
          %1585 = vdwg.mxu0
          %1586 = vmatprep.subr.bf16.mxu0 0
          %1587 = vmatpush1.bf16.msra.mxu0 %v1313
          %1588 = vmatprep.subr.bf16.mxu0 0
          %1589 = vmatpush1.bf16.msra.mxu0 %v1314
          %1590 = vmatprep.subr.bf16.mxu0 0
          %1591 = vmatpush1.bf16.msra.mxu0 %v1315
          %1592 = vmatprep.subr.bf16.mxu0 0
          %1593 = vmatpush1.bf16.msra.mxu0 %v1316
          %1594 = vmatprep.subr.bf16.mxu0 0
          %1595 = vmatpush1.bf16.msra.mxu0 %v1317
          %1596 = vmatprep.subr.bf16.mxu0 0
          %1597 = vmatpush1.bf16.msra.mxu0 %v1318
          %1598 = vmatprep.subr.bf16.mxu0 0
          %1599 = vmatpush1.bf16.msra.mxu0 %v1319
          %1600 = vmatprep.subr.bf16.mxu0 0
          %1601 = vmatpush1.bf16.msra.mxu0 %v1320
          %1602 = vmatprep.subr.bf16.mxu0 0
          %1603 = vmatpush1.bf16.msra.mxu0 %v1321
          %1604 = vmatprep.subr.bf16.mxu0 0
          %1605 = vmatpush1.bf16.msra.mxu0 %v1322
          %1606 = vmatprep.subr.bf16.mxu0 0
          %1607 = vmatpush1.bf16.msra.mxu0 %v1323
          %1608 = vmatprep.subr.bf16.mxu0 0
          %1609 = vmatpush1.bf16.msra.mxu0 %v1324
          %1610 = vmatprep.subr.bf16.mxu0 0
          %1611 = vmatpush1.bf16.msra.mxu0 %v1325
          %1612 = vmatprep.subr.bf16.mxu0 0
          %1613 = vmatpush1.bf16.msra.mxu0 %v1326
          %1614 = vmatprep.subr.bf16.mxu0 0
          %1615 = vmatpush1.bf16.msra.mxu0 %v1327
          %1616 = vmatprep.subr.bf16.mxu0 0
          %1617 = vmatpush1.bf16.msra.mxu0 %v1328
          %1618 = vmatprep.mubr.bf16.mxu0 %v788
          %1619 = vmatmul.mubr.bf16.gmra.mrb[0].mxu0 %v787
          %v1620 = vpop.f32.mrb[0].mxu0
          %v1621 = vadd.f32 %v1460, %v1620
          %v1622 = vpop.f32.mrb[0].mxu0
          %v1623 = vpop.f32.mrb[0].mxu0
          %v1624 = vadd.f32 %v1463, %v1623
          %v1625 = vpop.f32.mrb[0].mxu0
          %1626 = vmatprep.mubr.bf16.mxu0 %v796
          %1627 = vmatmul.mubr.bf16.gmra.mrb[0].mxu0 %v795
          %v1628 = vpop.f32.mrb[0].mxu0
          %v1629 = vadd.f32 %v1468, %v1628
          %v1630 = vpop.f32.mrb[0].mxu0
          %v1631 = vpop.f32.mrb[0].mxu0
          %v1632 = vadd.f32 %v1471, %v1631
          %v1633 = vpop.f32.mrb[0].mxu0
          %1634 = vmatprep.mubr.bf16.mxu0 %v804
          %1635 = vmatmul.mubr.bf16.gmra.mrb[0].mxu0 %v803
          %v1636 = vpop.f32.mrb[0].mxu0
          %v1637 = vadd.f32 %v1476, %v1636
          %v1638 = vpop.f32.mrb[0].mxu0
          %v1639 = vpop.f32.mrb[0].mxu0
          %v1640 = vadd.f32 %v1479, %v1639
          %v1641 = vpop.f32.mrb[0].mxu0
          %1642 = vmatprep.mubr.bf16.mxu0 %v812
          %1643 = vmatmul.mubr.bf16.gmra.mrb[0].mxu0 %v811
          %v1644 = vpop.f32.mrb[0].mxu0
          %v1645 = vadd.f32 %v1484, %v1644
          %v1646 = vpop.f32.mrb[0].mxu0
          %v1647 = vpop.f32.mrb[0].mxu0
          %v1648 = vadd.f32 %v1487, %v1647
          %v1649 = vpop.f32.mrb[0].mxu0
          %1650 = vmatprep.mubr.bf16.mxu0 %v820
          %1651 = vmatmul.mubr.bf16.gmra.mrb[0].mxu0 %v819
          %v1652 = vpop.f32.mrb[0].mxu0
          %v1653 = vadd.f32 %v1492, %v1652
          %v1654 = vpop.f32.mrb[0].mxu0
          %v1655 = vpop.f32.mrb[0].mxu0
          %v1656 = vadd.f32 %v1495, %v1655
          %v1657 = vpop.f32.mrb[0].mxu0
          %1658 = vmatprep.mubr.bf16.mxu0 %v828
          %1659 = vmatmul.mubr.bf16.gmra.mrb[0].mxu0 %v827
          %v1660 = vpop.f32.mrb[0].mxu0
          %v1661 = vadd.f32 %v1500, %v1660
          %v1662 = vpop.f32.mrb[0].mxu0
          %v1663 = vpop.f32.mrb[0].mxu0
          %v1664 = vadd.f32 %v1503, %v1663
          %v1665 = vpop.f32.mrb[0].mxu0
          %1666 = vmatprep.mubr.bf16.mxu0 %v836
          %1667 = vmatmul.mubr.bf16.gmra.mrb[0].mxu0 %v835
          %v1668 = vpop.f32.mrb[0].mxu0
          %v1669 = vadd.f32 %v1508, %v1668
          %v1670 = vpop.f32.mrb[0].mxu0
          %v1671 = vpop.f32.mrb[0].mxu0
          %v1672 = vadd.f32 %v1511, %v1671
          %v1673 = vpop.f32.mrb[0].mxu0
          %1674 = vmatprep.mubr.bf16.mxu0 %v844
          %1675 = vmatmul.mubr.bf16.gmra.mrb[0].mxu0 %v843
          %v1676 = vpop.f32.mrb[0].mxu0
          %v1677 = vadd.f32 %v1516, %v1676
          %v1678 = vpop.f32.mrb[0].mxu0
          %v1679 = vpop.f32.mrb[0].mxu0
          %v1680 = vadd.f32 %v1519, %v1679
          %v1681 = vpop.f32.mrb[0].mxu0
          %1682 = vmatprep.mubr.bf16.mxu0 %v852
          %1683 = vmatmul.mubr.bf16.gmra.mrb[0].mxu0 %v851
          %v1684 = vpop.f32.mrb[0].mxu0
          %v1685 = vadd.f32 %v1524, %v1684
          %v1686 = vpop.f32.mrb[0].mxu0
          %v1687 = vpop.f32.mrb[0].mxu0
          %v1688 = vadd.f32 %v1527, %v1687
          %v1689 = vpop.f32.mrb[0].mxu0
          %1690 = vmatprep.mubr.bf16.mxu0 %v860
          %1691 = vmatmul.mubr.bf16.gmra.mrb[0].mxu0 %v859
          %v1692 = vpop.f32.mrb[0].mxu0
          %v1693 = vadd.f32 %v1532, %v1692
          %v1694 = vpop.f32.mrb[0].mxu0
          %v1695 = vpop.f32.mrb[0].mxu0
          %v1696 = vadd.f32 %v1535, %v1695
          %v1697 = vpop.f32.mrb[0].mxu0
          %1698 = vmatprep.mubr.bf16.mxu0 %v868
          %1699 = vmatmul.mubr.bf16.gmra.mrb[0].mxu0 %v867
          %v1700 = vpop.f32.mrb[0].mxu0
          %v1701 = vadd.f32 %v1540, %v1700
          %v1702 = vpop.f32.mrb[0].mxu0
          %v1703 = vpop.f32.mrb[0].mxu0
          %v1704 = vadd.f32 %v1543, %v1703
          %v1705 = vpop.f32.mrb[0].mxu0
          %1706 = vmatprep.mubr.bf16.mxu0 %v876
          %1707 = vmatmul.mubr.bf16.gmra.mrb[0].mxu0 %v875
          %v1708 = vpop.f32.mrb[0].mxu0
          %v1709 = vadd.f32 %v1548, %v1708
          %v1710 = vpop.f32.mrb[0].mxu0
          %v1711 = vpop.f32.mrb[0].mxu0
          %v1712 = vadd.f32 %v1551, %v1711
          %v1713 = vpop.f32.mrb[0].mxu0
          %1714 = vmatprep.mubr.bf16.mxu0 %v884
          %1715 = vmatmul.mubr.bf16.gmra.mrb[0].mxu0 %v883
          %v1716 = vpop.f32.mrb[0].mxu0
          %v1717 = vadd.f32 %v1556, %v1716
          %v1718 = vpop.f32.mrb[0].mxu0
          %v1719 = vpop.f32.mrb[0].mxu0
          %v1720 = vadd.f32 %v1559, %v1719
          %v1721 = vpop.f32.mrb[0].mxu0
          %1722 = vmatprep.mubr.bf16.mxu0 %v892
          %1723 = vmatmul.mubr.bf16.gmra.mrb[0].mxu0 %v891
          %v1724 = vpop.f32.mrb[0].mxu0
          %v1725 = vadd.f32 %v1564, %v1724
          %v1726 = vpop.f32.mrb[0].mxu0
          %v1727 = vpop.f32.mrb[0].mxu0
          %v1728 = vadd.f32 %v1567, %v1727
          %v1729 = vpop.f32.mrb[0].mxu0
          %1730 = vmatprep.mubr.bf16.mxu0 %v900
          %1731 = vmatmul.mubr.bf16.gmra.mrb[0].mxu0 %v899
          %v1732 = vpop.f32.mrb[0].mxu0
          %v1733 = vadd.f32 %v1572, %v1732
          %v1734 = vpop.f32.mrb[0].mxu0
          %v1735 = vpop.f32.mrb[0].mxu0
          %v1736 = vadd.f32 %v1575, %v1735
          %v1737 = vpop.f32.mrb[0].mxu0
          %1738 = vmatprep.mubr.bf16.mxu0 %v908
          %1739 = vmatmul.mubr.bf16.gmra.mrb[0].mxu0 %v907
          %v1740 = vpop.f32.mrb[0].mxu0
          %v1741 = vadd.f32 %v1580, %v1740
          %v1742 = vpop.f32.mrb[0].mxu0
          %v1743 = vpop.f32.mrb[0].mxu0
          %v1744 = vadd.f32 %v1583, %v1743
          %v1745 = vpop.f32.mrb[0].mxu0
          %1746 = vdwg.mxu0
          %1747 = vmatprep.subr.bf16.mxu0 0
          %1748 = vmatpush1.bf16.msra.mxu0 %v1329
          %1749 = vmatprep.subr.bf16.mxu0 0
          %1750 = vmatpush1.bf16.msra.mxu0 %v1330
          %1751 = vmatprep.subr.bf16.mxu0 0
          %1752 = vmatpush1.bf16.msra.mxu0 %v1331
          %1753 = vmatprep.subr.bf16.mxu0 0
          %1754 = vmatpush1.bf16.msra.mxu0 %v1332
          %1755 = vmatprep.subr.bf16.mxu0 0
          %1756 = vmatpush1.bf16.msra.mxu0 %v1333
          %1757 = vmatprep.subr.bf16.mxu0 0
          %1758 = vmatpush1.bf16.msra.mxu0 %v1334
          %1759 = vmatprep.subr.bf16.mxu0 0
          %1760 = vmatpush1.bf16.msra.mxu0 %v1335
          %1761 = vmatprep.subr.bf16.mxu0 0
          %1762 = vmatpush1.bf16.msra.mxu0 %v1336
          %1763 = vmatprep.subr.bf16.mxu0 0
          %1764 = vmatpush1.bf16.msra.mxu0 %v1337
          %1765 = vmatprep.subr.bf16.mxu0 0
          %1766 = vmatpush1.bf16.msra.mxu0 %v1338
          %1767 = vmatprep.subr.bf16.mxu0 0
          %1768 = vmatpush1.bf16.msra.mxu0 %v1339
          %1769 = vmatprep.subr.bf16.mxu0 0
          %1770 = vmatpush1.bf16.msra.mxu0 %v1340
          %1771 = vmatprep.subr.bf16.mxu0 0
          %1772 = vmatpush1.bf16.msra.mxu0 %v1341
          %1773 = vmatprep.subr.bf16.mxu0 0
          %1774 = vmatpush1.bf16.msra.mxu0 %v1342
          %1775 = vmatprep.subr.bf16.mxu0 0
          %1776 = vmatpush1.bf16.msra.mxu0 %v1343
          %1777 = vmatprep.subr.bf16.mxu0 0
          %1778 = vmatpush1.bf16.msra.mxu0 %v1344
          %1779 = vmatprep.mubr.bf16.mxu0 %v790
          %1780 = vmatmul.mubr.bf16.gmra.mrb[0].mxu0 %v789
          %v1781 = vpop.f32.mrb[0].mxu0
          %v1782 = vadd.f32 %v1621, %v1781
          %v1783 = vpop.f32.mrb[0].mxu0
          %v1784 = vpop.f32.mrb[0].mxu0
          %v1785 = vadd.f32 %v1624, %v1784
          %v1786 = vpop.f32.mrb[0].mxu0
          %1787 = vmatprep.mubr.bf16.mxu0 %v798
          %1788 = vmatmul.mubr.bf16.gmra.mrb[0].mxu0 %v797
          %v1789 = vpop.f32.mrb[0].mxu0
          %v1790 = vadd.f32 %v1629, %v1789
          %v1791 = vpop.f32.mrb[0].mxu0
          %v1792 = vpop.f32.mrb[0].mxu0
          %v1793 = vadd.f32 %v1632, %v1792
          %v1794 = vpop.f32.mrb[0].mxu0
          %1795 = vmatprep.mubr.bf16.mxu0 %v806
          %1796 = vmatmul.mubr.bf16.gmra.mrb[0].mxu0 %v805
          %v1797 = vpop.f32.mrb[0].mxu0
          %v1798 = vadd.f32 %v1637, %v1797
          %v1799 = vpop.f32.mrb[0].mxu0
          %v1800 = vpop.f32.mrb[0].mxu0
          %v1801 = vadd.f32 %v1640, %v1800
          %v1802 = vpop.f32.mrb[0].mxu0
          %1803 = vmatprep.mubr.bf16.mxu0 %v814
          %1804 = vmatmul.mubr.bf16.gmra.mrb[0].mxu0 %v813
          %v1805 = vpop.f32.mrb[0].mxu0
          %v1806 = vadd.f32 %v1645, %v1805
          %v1807 = vpop.f32.mrb[0].mxu0
          %v1808 = vpop.f32.mrb[0].mxu0
          %v1809 = vadd.f32 %v1648, %v1808
          %v1810 = vpop.f32.mrb[0].mxu0
          %1811 = vmatprep.mubr.bf16.mxu0 %v822
          %1812 = vmatmul.mubr.bf16.gmra.mrb[0].mxu0 %v821
          %v1813 = vpop.f32.mrb[0].mxu0
          %v1814 = vadd.f32 %v1653, %v1813
          %v1815 = vpop.f32.mrb[0].mxu0
          %v1816 = vpop.f32.mrb[0].mxu0
          %v1817 = vadd.f32 %v1656, %v1816
          %v1818 = vpop.f32.mrb[0].mxu0
          %1819 = vmatprep.mubr.bf16.mxu0 %v830
          %1820 = vmatmul.mubr.bf16.gmra.mrb[0].mxu0 %v829
          %v1821 = vpop.f32.mrb[0].mxu0
          %v1822 = vadd.f32 %v1661, %v1821
          %v1823 = vpop.f32.mrb[0].mxu0
          %v1824 = vpop.f32.mrb[0].mxu0
          %v1825 = vadd.f32 %v1664, %v1824
          %v1826 = vpop.f32.mrb[0].mxu0
          %1827 = vmatprep.mubr.bf16.mxu0 %v838
          %1828 = vmatmul.mubr.bf16.gmra.mrb[0].mxu0 %v837
          %v1829 = vpop.f32.mrb[0].mxu0
          %v1830 = vadd.f32 %v1669, %v1829
          %v1831 = vpop.f32.mrb[0].mxu0
          %v1832 = vpop.f32.mrb[0].mxu0
          %v1833 = vadd.f32 %v1672, %v1832
          %v1834 = vpop.f32.mrb[0].mxu0
          %1835 = vmatprep.mubr.bf16.mxu0 %v846
          %1836 = vmatmul.mubr.bf16.gmra.mrb[0].mxu0 %v845
          %v1837 = vpop.f32.mrb[0].mxu0
          %v1838 = vadd.f32 %v1677, %v1837
          %v1839 = vpop.f32.mrb[0].mxu0
          %v1840 = vpop.f32.mrb[0].mxu0
          %v1841 = vadd.f32 %v1680, %v1840
          %v1842 = vpop.f32.mrb[0].mxu0
          %1843 = vmatprep.mubr.bf16.mxu0 %v854
          %1844 = vmatmul.mubr.bf16.gmra.mrb[0].mxu0 %v853
          %v1845 = vpop.f32.mrb[0].mxu0
          %v1846 = vadd.f32 %v1685, %v1845
          %v1847 = vpop.f32.mrb[0].mxu0
          %v1848 = vpop.f32.mrb[0].mxu0
          %v1849 = vadd.f32 %v1688, %v1848
          %v1850 = vpop.f32.mrb[0].mxu0
          %1851 = vmatprep.mubr.bf16.mxu0 %v862
          %1852 = vmatmul.mubr.bf16.gmra.mrb[0].mxu0 %v861
          %v1853 = vpop.f32.mrb[0].mxu0
          %v1854 = vadd.f32 %v1693, %v1853
          %v1855 = vpop.f32.mrb[0].mxu0
          %v1856 = vpop.f32.mrb[0].mxu0
          %v1857 = vadd.f32 %v1696, %v1856
          %v1858 = vpop.f32.mrb[0].mxu0
          %1859 = vmatprep.mubr.bf16.mxu0 %v870
          %1860 = vmatmul.mubr.bf16.gmra.mrb[0].mxu0 %v869
          %v1861 = vpop.f32.mrb[0].mxu0
          %v1862 = vadd.f32 %v1701, %v1861
          %v1863 = vpop.f32.mrb[0].mxu0
          %v1864 = vpop.f32.mrb[0].mxu0
          %v1865 = vadd.f32 %v1704, %v1864
          %v1866 = vpop.f32.mrb[0].mxu0
          %1867 = vmatprep.mubr.bf16.mxu0 %v878
          %1868 = vmatmul.mubr.bf16.gmra.mrb[0].mxu0 %v877
          %v1869 = vpop.f32.mrb[0].mxu0
          %v1870 = vadd.f32 %v1709, %v1869
          %v1871 = vpop.f32.mrb[0].mxu0
          %v1872 = vpop.f32.mrb[0].mxu0
          %v1873 = vadd.f32 %v1712, %v1872
          %v1874 = vpop.f32.mrb[0].mxu0
          %1875 = vmatprep.mubr.bf16.mxu0 %v886
          %1876 = vmatmul.mubr.bf16.gmra.mrb[0].mxu0 %v885
          %v1877 = vpop.f32.mrb[0].mxu0
          %v1878 = vadd.f32 %v1717, %v1877
          %v1879 = vpop.f32.mrb[0].mxu0
          %v1880 = vpop.f32.mrb[0].mxu0
          %v1881 = vadd.f32 %v1720, %v1880
          %v1882 = vpop.f32.mrb[0].mxu0
          %1883 = vmatprep.mubr.bf16.mxu0 %v894
          %1884 = vmatmul.mubr.bf16.gmra.mrb[0].mxu0 %v893
          %v1885 = vpop.f32.mrb[0].mxu0
          %v1886 = vadd.f32 %v1725, %v1885
          %v1887 = vpop.f32.mrb[0].mxu0
          %v1888 = vpop.f32.mrb[0].mxu0
          %v1889 = vadd.f32 %v1728, %v1888
          %v1890 = vpop.f32.mrb[0].mxu0
          %1891 = vmatprep.mubr.bf16.mxu0 %v902
          %1892 = vmatmul.mubr.bf16.gmra.mrb[0].mxu0 %v901
          %v1893 = vpop.f32.mrb[0].mxu0
          %v1894 = vadd.f32 %v1733, %v1893
          %v1895 = vpop.f32.mrb[0].mxu0
          %v1896 = vpop.f32.mrb[0].mxu0
          %v1897 = vadd.f32 %v1736, %v1896
          %v1898 = vpop.f32.mrb[0].mxu0
          %1899 = vmatprep.mubr.bf16.mxu0 %v910
          %1900 = vmatmul.mubr.bf16.gmra.mrb[0].mxu0 %v909
          %v1901 = vpop.f32.mrb[0].mxu0
          %v1902 = vadd.f32 %v1741, %v1901
          %v1903 = vpop.f32.mrb[0].mxu0
          %v1904 = vpop.f32.mrb[0].mxu0
          %v1905 = vadd.f32 %v1744, %v1904
          %v1906 = vpop.f32.mrb[0].mxu0
          %1907 = vdwg.mxu0
          %1908 = vmatprep.subr.bf16.mxu0 0
          %1909 = vmatpush1.bf16.msra.mxu0 %v1345
          %1910 = vmatprep.subr.bf16.mxu0 0
          %1911 = vmatpush1.bf16.msra.mxu0 %v1346
          %1912 = vmatprep.subr.bf16.mxu0 0
          %1913 = vmatpush1.bf16.msra.mxu0 %v1347
          %1914 = vmatprep.subr.bf16.mxu0 0
          %1915 = vmatpush1.bf16.msra.mxu0 %v1348
          %1916 = vmatprep.subr.bf16.mxu0 0
          %1917 = vmatpush1.bf16.msra.mxu0 %v1349
          %1918 = vmatprep.subr.bf16.mxu0 0
          %1919 = vmatpush1.bf16.msra.mxu0 %v1350
          %1920 = vmatprep.subr.bf16.mxu0 0
          %1921 = vmatpush1.bf16.msra.mxu0 %v1351
          %1922 = vmatprep.subr.bf16.mxu0 0
          %1923 = vmatpush1.bf16.msra.mxu0 %v1352
          %1924 = vmatprep.subr.bf16.mxu0 0
          %1925 = vmatpush1.bf16.msra.mxu0 %v1353
          %1926 = vmatprep.subr.bf16.mxu0 0
          %1927 = vmatpush1.bf16.msra.mxu0 %v1354
          %1928 = vmatprep.subr.bf16.mxu0 0
          %1929 = vmatpush1.bf16.msra.mxu0 %v1355
          %1930 = vmatprep.subr.bf16.mxu0 0
          %1931 = vmatpush1.bf16.msra.mxu0 %v1356
          %1932 = vmatprep.subr.bf16.mxu0 0
          %1933 = vmatpush1.bf16.msra.mxu0 %v1357
          %1934 = vmatprep.subr.bf16.mxu0 0
          %1935 = vmatpush1.bf16.msra.mxu0 %v1358
          %1936 = vmatprep.subr.bf16.mxu0 0
          %1937 = vmatpush1.bf16.msra.mxu0 %v1359
          %1938 = vmatprep.subr.bf16.mxu0 0
          %1939 = vmatpush1.bf16.msra.mxu0 %v1360
          %1940 = vmatprep.mubr.bf16.mxu0 %v792
          %1941 = vmatmul.mubr.bf16.gmra.mrb[0].mxu0 %v791
          %v1942 = vpop.f32.mrb[0].mxu0
          %v1943 = vadd.f32 %v1782, %v1942
          %v1944 = vpop.f32.mrb[0].mxu0
          %v1945 = vpop.f32.mrb[0].mxu0
          %v1946 = vadd.f32 %v1785, %v1945
          %v1947 = vpop.f32.mrb[0].mxu0
          %1948 = vmatprep.mubr.bf16.mxu0 %v800
          %1949 = vmatmul.mubr.bf16.gmra.mrb[0].mxu0 %v799
          %v1950 = vpop.f32.mrb[0].mxu0
          %v1951 = vadd.f32 %v1790, %v1950
          %v1952 = vpop.f32.mrb[0].mxu0
          %v1953 = vpop.f32.mrb[0].mxu0
          %v1954 = vadd.f32 %v1793, %v1953
          %v1955 = vpop.f32.mrb[0].mxu0
          %1956 = vmatprep.mubr.bf16.mxu0 %v808
          %1957 = vmatmul.mubr.bf16.gmra.mrb[0].mxu0 %v807
          %v1958 = vpop.f32.mrb[0].mxu0
          %v1959 = vadd.f32 %v1798, %v1958
          %v1960 = vpop.f32.mrb[0].mxu0
          %v1961 = vpop.f32.mrb[0].mxu0
          %v1962 = vadd.f32 %v1801, %v1961
          %v1963 = vpop.f32.mrb[0].mxu0
          %1964 = vmatprep.mubr.bf16.mxu0 %v816
          %1965 = vmatmul.mubr.bf16.gmra.mrb[0].mxu0 %v815
          %v1966 = vpop.f32.mrb[0].mxu0
          %v1967 = vadd.f32 %v1806, %v1966
          %v1968 = vpop.f32.mrb[0].mxu0
          %v1969 = vpop.f32.mrb[0].mxu0
          %v1970 = vadd.f32 %v1809, %v1969
          %v1971 = vpop.f32.mrb[0].mxu0
          %1972 = vmatprep.mubr.bf16.mxu0 %v824
          %1973 = vmatmul.mubr.bf16.gmra.mrb[0].mxu0 %v823
          %v1974 = vpop.f32.mrb[0].mxu0
          %v1975 = vadd.f32 %v1814, %v1974
          %v1976 = vpop.f32.mrb[0].mxu0
          %v1977 = vpop.f32.mrb[0].mxu0
          %v1978 = vadd.f32 %v1817, %v1977
          %v1979 = vpop.f32.mrb[0].mxu0
          %1980 = vmatprep.mubr.bf16.mxu0 %v832
          %1981 = vmatmul.mubr.bf16.gmra.mrb[0].mxu0 %v831
          %v1982 = vpop.f32.mrb[0].mxu0
          %v1983 = vadd.f32 %v1822, %v1982
          %v1984 = vpop.f32.mrb[0].mxu0
          %v1985 = vpop.f32.mrb[0].mxu0
          %v1986 = vadd.f32 %v1825, %v1985
          %v1987 = vpop.f32.mrb[0].mxu0
          %1988 = vmatprep.mubr.bf16.mxu0 %v840
          %1989 = vmatmul.mubr.bf16.gmra.mrb[0].mxu0 %v839
          %v1990 = vpop.f32.mrb[0].mxu0
          %v1991 = vadd.f32 %v1830, %v1990
          %v1992 = vpop.f32.mrb[0].mxu0
          %v1993 = vpop.f32.mrb[0].mxu0
          %v1994 = vadd.f32 %v1833, %v1993
          %v1995 = vpop.f32.mrb[0].mxu0
          %1996 = vmatprep.mubr.bf16.mxu0 %v848
          %1997 = vmatmul.mubr.bf16.gmra.mrb[0].mxu0 %v847
          %v1998 = vpop.f32.mrb[0].mxu0
          %v1999 = vadd.f32 %v1838, %v1998
          %v2000 = vpop.f32.mrb[0].mxu0
          %v2001 = vpop.f32.mrb[0].mxu0
          %v2002 = vadd.f32 %v1841, %v2001
          %v2003 = vpop.f32.mrb[0].mxu0
          %2004 = vmatprep.mubr.bf16.mxu0 %v856
          %2005 = vmatmul.mubr.bf16.gmra.mrb[0].mxu0 %v855
          %v2006 = vpop.f32.mrb[0].mxu0
          %v2007 = vadd.f32 %v1846, %v2006
          %v2008 = vpop.f32.mrb[0].mxu0
          %v2009 = vpop.f32.mrb[0].mxu0
          %v2010 = vadd.f32 %v1849, %v2009
          %v2011 = vpop.f32.mrb[0].mxu0
          %2012 = vmatprep.mubr.bf16.mxu0 %v864
          %2013 = vmatmul.mubr.bf16.gmra.mrb[0].mxu0 %v863
          %v2014 = vpop.f32.mrb[0].mxu0
          %v2015 = vadd.f32 %v1854, %v2014
          %v2016 = vpop.f32.mrb[0].mxu0
          %v2017 = vpop.f32.mrb[0].mxu0
          %v2018 = vadd.f32 %v1857, %v2017
          %v2019 = vpop.f32.mrb[0].mxu0
          %2020 = vmatprep.mubr.bf16.mxu0 %v872
          %2021 = vmatmul.mubr.bf16.gmra.mrb[0].mxu0 %v871
          %v2022 = vpop.f32.mrb[0].mxu0
          %v2023 = vadd.f32 %v1862, %v2022
          %v2024 = vpop.f32.mrb[0].mxu0
          %v2025 = vpop.f32.mrb[0].mxu0
          %v2026 = vadd.f32 %v1865, %v2025
          %v2027 = vpop.f32.mrb[0].mxu0
          %2028 = vmatprep.mubr.bf16.mxu0 %v880
          %2029 = vmatmul.mubr.bf16.gmra.mrb[0].mxu0 %v879
          %v2030 = vpop.f32.mrb[0].mxu0
          %v2031 = vadd.f32 %v1870, %v2030
          %v2032 = vpop.f32.mrb[0].mxu0
          %v2033 = vpop.f32.mrb[0].mxu0
          %v2034 = vadd.f32 %v1873, %v2033
          %v2035 = vpop.f32.mrb[0].mxu0
          %2036 = vmatprep.mubr.bf16.mxu0 %v888
          %2037 = vmatmul.mubr.bf16.gmra.mrb[0].mxu0 %v887
          %v2038 = vpop.f32.mrb[0].mxu0
          %v2039 = vadd.f32 %v1878, %v2038
          %v2040 = vpop.f32.mrb[0].mxu0
          %v2041 = vpop.f32.mrb[0].mxu0
          %v2042 = vadd.f32 %v1881, %v2041
          %v2043 = vpop.f32.mrb[0].mxu0
          %2044 = vmatprep.mubr.bf16.mxu0 %v896
          %2045 = vmatmul.mubr.bf16.gmra.mrb[0].mxu0 %v895
          %v2046 = vpop.f32.mrb[0].mxu0
          %v2047 = vadd.f32 %v1886, %v2046
          %v2048 = vpop.f32.mrb[0].mxu0
          %v2049 = vpop.f32.mrb[0].mxu0
          %v2050 = vadd.f32 %v1889, %v2049
          %v2051 = vpop.f32.mrb[0].mxu0
          %2052 = vmatprep.mubr.bf16.mxu0 %v904
          %2053 = vmatmul.mubr.bf16.gmra.mrb[0].mxu0 %v903
          %v2054 = vpop.f32.mrb[0].mxu0
          %v2055 = vadd.f32 %v1894, %v2054
          %v2056 = vpop.f32.mrb[0].mxu0
          %v2057 = vpop.f32.mrb[0].mxu0
          %v2058 = vadd.f32 %v1897, %v2057
          %v2059 = vpop.f32.mrb[0].mxu0
          %2060 = vmatprep.mubr.bf16.mxu0 %v912
          %2061 = vmatmul.mubr.bf16.gmra.mrb[0].mxu0 %v911
          %v2062 = vpop.f32.mrb[0].mxu0
          %v2063 = vadd.f32 %v1902, %v2062
          %v2064 = vpop.f32.mrb[0].mxu0
          %v2065 = vpop.f32.mrb[0].mxu0
          %v2066 = vadd.f32 %v1905, %v2065
          %v2067 = vpop.f32.mrb[0].mxu0
          %2068 = vdwg.mxu0
          %v2069 = vpack.c.bf16 %v1946, %v1943
          %v2070 = vpack.c.bf16 %v1954, %v1951
          %v2071 = vpack.c.bf16 %v1962, %v1959
          %v2072 = vpack.c.bf16 %v1970, %v1967
          %v2073 = vpack.c.bf16 %v1978, %v1975
          %v2074 = vpack.c.bf16 %v1986, %v1983
          %v2075 = vpack.c.bf16 %v1994, %v1991
          %v2076 = vpack.c.bf16 %v2002, %v1999
          %v2077 = vpack.c.bf16 %v2010, %v2007
          %v2078 = vpack.c.bf16 %v2018, %v2015
          %v2079 = vpack.c.bf16 %v2026, %v2023
          %v2080 = vpack.c.bf16 %v2034, %v2031
          %v2081 = vpack.c.bf16 %v2042, %v2039
          %v2082 = vpack.c.bf16 %v2050, %v2047
          %v2083 = vpack.c.bf16 %v2058, %v2055
          %v2084 = vpack.c.bf16 %v2066, %v2063
          %2085 = vst [vmem:[#allocation2] sm:$0xff] %v2069
          %2086 = vst [vmem:[#allocation2 + $0x8] sm:$0xff] %v2070
          %2087 = vst [vmem:[#allocation2 + $0x10] sm:$0xff] %v2071
          %2088 = vst [vmem:[#allocation2 + $0x18] sm:$0xff] %v2072
          %2089 = vst [vmem:[#allocation2 + $0x20] sm:$0xff] %v2073
          %2090 = vst [vmem:[#allocation2 + $0x28] sm:$0xff] %v2074
          %2091 = vst [vmem:[#allocation2 + $0x30] sm:$0xff] %v2075
          %2092 = vst [vmem:[#allocation2 + $0x38] sm:$0xff] %v2076
          %2093 = vst [vmem:[#allocation2 + $0x40] sm:$0xff] %v2077
          %2094 = vst [vmem:[#allocation2 + $0x48] sm:$0xff] %v2078
          %2095 = vst [vmem:[#allocation2 + $0x50] sm:$0xff] %v2079
          %2096 = vst [vmem:[#allocation2 + $0x58] sm:$0xff] %v2080
          %2097 = vst [vmem:[#allocation2 + $0x60] sm:$0xff] %v2081
          %2098 = vst [vmem:[#allocation2 + $0x68] sm:$0xff] %v2082
          %2099 = vst [vmem:[#allocation2 + $0x70] sm:$0xff] %v2083
          %2100 = vst [vmem:[#allocation2 + $0x78] sm:$0xff] %v2084
          %vm2101 = vcmask 0
          %2102 = vst.msk [vmem:[#allocation3] sm:$0x1] %vm2101, 0.0
        $region40: #{tpu_custom_call.1} parent=27 // pred_fallthru
          _
        %s2103 = smul.u32 %s16, 128
        %s2104 = sshra.s32 %s2103, 4
        %s2105 = sand.u32 %s2103, 15
        %s2106 = smul.addr %s2104, 8
        %s2107 = scalar_lea.vmem [#allocation2], %s2106
        %v2108 = vld [vmem:[%s2107] sm:$0xff]
        %v2109 = vld [vmem:[%s2107 + $0x8] sm:$0xff]
        %v2110 = vld [vmem:[%s2107 + $0x10] sm:$0xff]
        %v2111 = vld [vmem:[%s2107 + $0x18] sm:$0xff]
        %v2112 = vld [vmem:[%s2107 + $0x20] sm:$0xff]
        %v2113 = vld [vmem:[%s2107 + $0x28] sm:$0xff]
        %v2114 = vld [vmem:[%s2107 + $0x30] sm:$0xff]
        %v2115 = vld [vmem:[%s2107 + $0x38] sm:$0xff]
        %v2116 = vunpack.c.l.bf16 %v2108
        %v2117 = vunpack.c.h.bf16 %v2108
        %v2118 = vunpack.c.l.bf16 %v2109
        %v2119 = vunpack.c.h.bf16 %v2109
        %v2120 = vunpack.c.l.bf16 %v2110
        %v2121 = vunpack.c.h.bf16 %v2110
        %v2122 = vunpack.c.l.bf16 %v2111
        %v2123 = vunpack.c.h.bf16 %v2111
        %v2124 = vunpack.c.l.bf16 %v2112
        %v2125 = vunpack.c.h.bf16 %v2112
        %v2126 = vunpack.c.l.bf16 %v2113
        %v2127 = vunpack.c.h.bf16 %v2113
        %v2128 = vunpack.c.l.bf16 %v2114
        %v2129 = vunpack.c.h.bf16 %v2114
        %v2130 = vunpack.c.l.bf16 %v2115
        %v2131 = vunpack.c.h.bf16 %v2115
        %v2132 = vmul.f32 %v2116, 2.0
        %v2133 = vmul.f32 %v2117, 2.0
        %v2134 = vmul.f32 %v2118, 2.0
        %v2135 = vmul.f32 %v2119, 2.0
        %v2136 = vmul.f32 %v2120, 2.0
        %v2137 = vmul.f32 %v2121, 2.0
        %v2138 = vmul.f32 %v2122, 2.0
        %v2139 = vmul.f32 %v2123, 2.0
        %v2140 = vmul.f32 %v2124, 2.0
        %v2141 = vmul.f32 %v2125, 2.0
        %v2142 = vmul.f32 %v2126, 2.0
        %v2143 = vmul.f32 %v2127, 2.0
        %v2144 = vmul.f32 %v2128, 2.0
        %v2145 = vmul.f32 %v2129, 2.0
        %v2146 = vmul.f32 %v2130, 2.0
        %v2147 = vmul.f32 %v2131, 2.0
        %v2148 = vpack.c.bf16 %v2133, %v2132
        %v2149 = vpack.c.bf16 %v2135, %v2134
        %v2150 = vpack.c.bf16 %v2137, %v2136
        %v2151 = vpack.c.bf16 %v2139, %v2138
        %v2152 = vpack.c.bf16 %v2141, %v2140
        %v2153 = vpack.c.bf16 %v2143, %v2142
        %v2154 = vpack.c.bf16 %v2145, %v2144
        %v2155 = vpack.c.bf16 %v2147, %v2146
        %v2156 = vld [vmem:[#allocation2] sm:$0xff]
        %v2157 = vld [vmem:[#allocation2 + $0x8] sm:$0xff]
        %v2158 = vld [vmem:[#allocation2 + $0x10] sm:$0xff]
        %v2159 = vld [vmem:[#allocation2 + $0x18] sm:$0xff]
        %v2160 = vld [vmem:[#allocation2 + $0x20] sm:$0xff]
        %v2161 = vld [vmem:[#allocation2 + $0x28] sm:$0xff]
        %v2162 = vld [vmem:[#allocation2 + $0x30] sm:$0xff]
        %v2163 = vld [vmem:[#allocation2 + $0x38] sm:$0xff]
        %v2164 = vld [vmem:[#allocation2 + $0x40] sm:$0xff]
        %v2165 = vld [vmem:[#allocation2 + $0x48] sm:$0xff]
        %v2166 = vld [vmem:[#allocation2 + $0x50] sm:$0xff]
        %v2167 = vld [vmem:[#allocation2 + $0x58] sm:$0xff]
        %v2168 = vld [vmem:[#allocation2 + $0x60] sm:$0xff]
        %v2169 = vld [vmem:[#allocation2 + $0x68] sm:$0xff]
        %v2170 = vld [vmem:[#allocation2 + $0x70] sm:$0xff]
        %v2171 = vld [vmem:[#allocation2 + $0x78] sm:$0xff]
        %2172 = vmatprep.subr.bf16.mxu0 0
        %2173 = vmatpush1.bf16.xpose.msra.mxu0 %v2148
        %2174 = vmatprep.subr.bf16.mxu0 0
        %2175 = vmatpush1.bf16.xpose.msra.mxu0 %v2149
        %2176 = vmatprep.subr.bf16.mxu0 0
        %2177 = vmatpush1.bf16.xpose.msra.mxu0 %v2150
        %2178 = vmatprep.subr.bf16.mxu0 0
        %2179 = vmatpush1.bf16.xpose.msra.mxu0 %v2151
        %2180 = vmatprep.subr.bf16.mxu0 0
        %2181 = vmatpush1.bf16.xpose.msra.mxu0 %v2152
        %2182 = vmatprep.subr.bf16.mxu0 0
        %2183 = vmatpush1.bf16.xpose.msra.mxu0 %v2153
        %2184 = vmatprep.subr.bf16.mxu0 0
        %2185 = vmatpush1.bf16.xpose.msra.mxu0 %v2154
        %2186 = vmatprep.subr.bf16.mxu0 0
        %2187 = vmatpush1.bf16.xpose.msra.mxu0 %v2155
        %2188 = vmatprep.subr.bf16.mxu0 0
        %2189 = vmatpush1.bf16.xpose.msra.mxu0 0
        %2190 = vmatprep.subr.bf16.mxu0 0
        %2191 = vmatpush1.bf16.xpose.msra.mxu0 0
        %2192 = vmatprep.subr.bf16.mxu0 0
        %2193 = vmatpush1.bf16.xpose.msra.mxu0 0
        %2194 = vmatprep.subr.bf16.mxu0 0
        %2195 = vmatpush1.bf16.xpose.msra.mxu0 0
        %2196 = vmatprep.subr.bf16.mxu0 0
        %2197 = vmatpush1.bf16.xpose.msra.mxu0 0
        %2198 = vmatprep.subr.bf16.mxu0 0
        %2199 = vmatpush1.bf16.xpose.msra.mxu0 0
        %2200 = vmatprep.subr.bf16.mxu0 0
        %2201 = vmatpush1.bf16.xpose.msra.mxu0 0
        %2202 = vmatprep.subr.bf16.mxu0 0
        %2203 = vmatpush1.bf16.xpose.msra.mxu0 0
        %2204 = vmatprep.mubr.bf16.mxu0 0
        %2205 = vmatmul.mubr.bf16.gmra.mrb[0].mxu0 %v2156
        %v2206 = vpop.f32.mrb[0].mxu0
        %v2207 = vadd.f32 0.0, %v2206
        %v2208 = vpop.f32.mrb[0].mxu0
        %v2209 = vpop.f32.mrb[0].mxu0
        %v2210 = vadd.f32 0.0, %v2209
        %v2211 = vpop.f32.mrb[0].mxu0
        %2212 = vmatprep.mubr.bf16.mxu0 0
        %2213 = vmatmul.mubr.bf16.gmra.mrb[0].mxu0 %v2157
        %v2214 = vpop.f32.mrb[0].mxu0
        %v2215 = vadd.f32 0.0, %v2214
        %v2216 = vpop.f32.mrb[0].mxu0
        %v2217 = vpop.f32.mrb[0].mxu0
        %v2218 = vadd.f32 0.0, %v2217
        %v2219 = vpop.f32.mrb[0].mxu0
        %2220 = vmatprep.mubr.bf16.mxu0 0
        %2221 = vmatmul.mubr.bf16.gmra.mrb[0].mxu0 %v2158
        %v2222 = vpop.f32.mrb[0].mxu0
        %v2223 = vadd.f32 0.0, %v2222
        %v2224 = vpop.f32.mrb[0].mxu0
        %v2225 = vpop.f32.mrb[0].mxu0
        %v2226 = vadd.f32 0.0, %v2225
        %v2227 = vpop.f32.mrb[0].mxu0
        %2228 = vmatprep.mubr.bf16.mxu0 0
        %2229 = vmatmul.mubr.bf16.gmra.mrb[0].mxu0 %v2159
        %v2230 = vpop.f32.mrb[0].mxu0
        %v2231 = vadd.f32 0.0, %v2230
        %v2232 = vpop.f32.mrb[0].mxu0
        %v2233 = vpop.f32.mrb[0].mxu0
        %v2234 = vadd.f32 0.0, %v2233
        %v2235 = vpop.f32.mrb[0].mxu0
        %2236 = vmatprep.mubr.bf16.mxu0 0
        %2237 = vmatmul.mubr.bf16.gmra.mrb[0].mxu0 %v2160
        %v2238 = vpop.f32.mrb[0].mxu0
        %v2239 = vadd.f32 0.0, %v2238
        %v2240 = vpop.f32.mrb[0].mxu0
        %v2241 = vpop.f32.mrb[0].mxu0
        %v2242 = vadd.f32 0.0, %v2241
        %v2243 = vpop.f32.mrb[0].mxu0
        %2244 = vmatprep.mubr.bf16.mxu0 0
        %2245 = vmatmul.mubr.bf16.gmra.mrb[0].mxu0 %v2161
        %v2246 = vpop.f32.mrb[0].mxu0
        %v2247 = vadd.f32 0.0, %v2246
        %v2248 = vpop.f32.mrb[0].mxu0
        %v2249 = vpop.f32.mrb[0].mxu0
        %v2250 = vadd.f32 0.0, %v2249
        %v2251 = vpop.f32.mrb[0].mxu0
        %2252 = vmatprep.mubr.bf16.mxu0 0
        %2253 = vmatmul.mubr.bf16.gmra.mrb[0].mxu0 %v2162
        %v2254 = vpop.f32.mrb[0].mxu0
        %v2255 = vadd.f32 0.0, %v2254
        %v2256 = vpop.f32.mrb[0].mxu0
        %v2257 = vpop.f32.mrb[0].mxu0
        %v2258 = vadd.f32 0.0, %v2257
        %v2259 = vpop.f32.mrb[0].mxu0
        %2260 = vmatprep.mubr.bf16.mxu0 0
        %2261 = vmatmul.mubr.bf16.gmra.mrb[0].mxu0 %v2163
        %v2262 = vpop.f32.mrb[0].mxu0
        %v2263 = vadd.f32 0.0, %v2262
        %v2264 = vpop.f32.mrb[0].mxu0
        %v2265 = vpop.f32.mrb[0].mxu0
        %v2266 = vadd.f32 0.0, %v2265
        %v2267 = vpop.f32.mrb[0].mxu0
        %2268 = vmatprep.mubr.bf16.mxu0 0
        %2269 = vmatmul.mubr.bf16.gmra.mrb[0].mxu0 %v2164
        %v2270 = vpop.f32.mrb[0].mxu0
        %v2271 = vadd.f32 0.0, %v2270
        %v2272 = vpop.f32.mrb[0].mxu0
        %v2273 = vpop.f32.mrb[0].mxu0
        %v2274 = vadd.f32 0.0, %v2273
        %v2275 = vpop.f32.mrb[0].mxu0
        %2276 = vmatprep.mubr.bf16.mxu0 0
        %2277 = vmatmul.mubr.bf16.gmra.mrb[0].mxu0 %v2165
        %v2278 = vpop.f32.mrb[0].mxu0
        %v2279 = vadd.f32 0.0, %v2278
        %v2280 = vpop.f32.mrb[0].mxu0
        %v2281 = vpop.f32.mrb[0].mxu0
        %v2282 = vadd.f32 0.0, %v2281
        %v2283 = vpop.f32.mrb[0].mxu0
        %2284 = vmatprep.mubr.bf16.mxu0 0
        %2285 = vmatmul.mubr.bf16.gmra.mrb[0].mxu0 %v2166
        %v2286 = vpop.f32.mrb[0].mxu0
        %v2287 = vadd.f32 0.0, %v2286
        %v2288 = vpop.f32.mrb[0].mxu0
        %v2289 = vpop.f32.mrb[0].mxu0
        %v2290 = vadd.f32 0.0, %v2289
        %v2291 = vpop.f32.mrb[0].mxu0
        %2292 = vmatprep.mubr.bf16.mxu0 0
        %2293 = vmatmul.mubr.bf16.gmra.mrb[0].mxu0 %v2167
        %v2294 = vpop.f32.mrb[0].mxu0
        %v2295 = vadd.f32 0.0, %v2294
        %v2296 = vpop.f32.mrb[0].mxu0
        %v2297 = vpop.f32.mrb[0].mxu0
        %v2298 = vadd.f32 0.0, %v2297
        %v2299 = vpop.f32.mrb[0].mxu0
        %2300 = vmatprep.mubr.bf16.mxu0 0
        %2301 = vmatmul.mubr.bf16.gmra.mrb[0].mxu0 %v2168
        %v2302 = vpop.f32.mrb[0].mxu0
        %v2303 = vadd.f32 0.0, %v2302
        %v2304 = vpop.f32.mrb[0].mxu0
        %v2305 = vpop.f32.mrb[0].mxu0
        %v2306 = vadd.f32 0.0, %v2305
        %v2307 = vpop.f32.mrb[0].mxu0
        %2308 = vmatprep.mubr.bf16.mxu0 0
        %2309 = vmatmul.mubr.bf16.gmra.mrb[0].mxu0 %v2169
        %v2310 = vpop.f32.mrb[0].mxu0
        %v2311 = vadd.f32 0.0, %v2310
        %v2312 = vpop.f32.mrb[0].mxu0
        %v2313 = vpop.f32.mrb[0].mxu0
        %v2314 = vadd.f32 0.0, %v2313
        %v2315 = vpop.f32.mrb[0].mxu0
        %2316 = vmatprep.mubr.bf16.mxu0 0
        %2317 = vmatmul.mubr.bf16.gmra.mrb[0].mxu0 %v2170
        %v2318 = vpop.f32.mrb[0].mxu0
        %v2319 = vadd.f32 0.0, %v2318
        %v2320 = vpop.f32.mrb[0].mxu0
        %v2321 = vpop.f32.mrb[0].mxu0
        %v2322 = vadd.f32 0.0, %v2321
        %v2323 = vpop.f32.mrb[0].mxu0
        %2324 = vmatprep.mubr.bf16.mxu0 0
        %2325 = vmatmul.mubr.bf16.gmra.mrb[0].mxu0 %v2171
        %v2326 = vpop.f32.mrb[0].mxu0
        %v2327 = vadd.f32 0.0, %v2326
        %v2328 = vpop.f32.mrb[0].mxu0
        %v2329 = vpop.f32.mrb[0].mxu0
        %v2330 = vadd.f32 0.0, %v2329
        %v2331 = vpop.f32.mrb[0].mxu0
        %2332 = vdwg.mxu0
        %v2333 = vlaneseq
        %v2334 = vshrl.u32 %v2333, 7
        %v2335 = vadd.s32 %v2334, 8
        %v2336 = vadd.s32 %v2334, 16
        %v2337 = vadd.s32 %v2334, 24
        %v2338 = vadd.s32 %v2334, 32
        %v2339 = vadd.s32 %v2334, 40
        %v2340 = vadd.s32 %v2334, 48
        %v2341 = vadd.s32 %v2334, 56
        %v2342 = vadd.s32 %v2334, 64
        %v2343 = vadd.s32 %v2334, 72
        %v2344 = vadd.s32 %v2334, 80
        %v2345 = vadd.s32 %v2334, 88
        %v2346 = vadd.s32 %v2334, 96
        %v2347 = vadd.s32 %v2334, 104
        %v2348 = vadd.s32 %v2334, 112
        %v2349 = vadd.s32 %v2334, 120
        %v2350 = vadd.s32 %v2334, 128
        %v2351 = vadd.s32 %v2334, 136
        %v2352 = vadd.s32 %v2334, 144
        %v2353 = vadd.s32 %v2334, 152
        %v2354 = vadd.s32 %v2334, 160
        %v2355 = vadd.s32 %v2334, 168
        %v2356 = vadd.s32 %v2334, 176
        %v2357 = vadd.s32 %v2334, 184
        %v2358 = vadd.s32 %v2334, 192
        %v2359 = vadd.s32 %v2334, 200
        %v2360 = vadd.s32 %v2334, 208
        %v2361 = vadd.s32 %v2334, 216
        %v2362 = vadd.s32 %v2334, 224
        %v2363 = vadd.s32 %v2334, 232
        %v2364 = vadd.s32 %v2334, 240
        %v2365 = vadd.s32 %v2334, 248
        %v2366 = vlaneseq
        %v2367 = vand.u32 %v2366, 127
        %v2368 = vstv %s2103
        %v2369 = vadd.s32 %v2367, %v2368
        %v2370 = vsub.s32 %v2334, %v2369
        %v2371 = vsub.s32 %v2335, %v2369
        %v2372 = vsub.s32 %v2336, %v2369
        %v2373 = vsub.s32 %v2337, %v2369
        %v2374 = vsub.s32 %v2338, %v2369
        %v2375 = vsub.s32 %v2339, %v2369
        %v2376 = vsub.s32 %v2340, %v2369
        %v2377 = vsub.s32 %v2341, %v2369
        %v2378 = vsub.s32 %v2342, %v2369
        %v2379 = vsub.s32 %v2343, %v2369
        %v2380 = vsub.s32 %v2344, %v2369
        %v2381 = vsub.s32 %v2345, %v2369
        %v2382 = vsub.s32 %v2346, %v2369
        %v2383 = vsub.s32 %v2347, %v2369
        %v2384 = vsub.s32 %v2348, %v2369
        %v2385 = vsub.s32 %v2349, %v2369
        %v2386 = vsub.s32 %v2350, %v2369
        %v2387 = vsub.s32 %v2351, %v2369
        %v2388 = vsub.s32 %v2352, %v2369
        %v2389 = vsub.s32 %v2353, %v2369
        %v2390 = vsub.s32 %v2354, %v2369
        %v2391 = vsub.s32 %v2355, %v2369
        %v2392 = vsub.s32 %v2356, %v2369
        %v2393 = vsub.s32 %v2357, %v2369
        %v2394 = vsub.s32 %v2358, %v2369
        %v2395 = vsub.s32 %v2359, %v2369
        %v2396 = vsub.s32 %v2360, %v2369
        %v2397 = vsub.s32 %v2361, %v2369
        %v2398 = vsub.s32 %v2362, %v2369
        %v2399 = vsub.s32 %v2363, %v2369
        %v2400 = vsub.s32 %v2364, %v2369
        %v2401 = vsub.s32 %v2365, %v2369
        %vm2402 = vcmp.eq.s32.totalorder %v2370, 0
        %vm2403 = vcmp.eq.s32.totalorder %v2371, 0
        %vm2404 = vcmp.eq.s32.totalorder %v2372, 0
        %vm2405 = vcmp.eq.s32.totalorder %v2373, 0
        %vm2406 = vcmp.eq.s32.totalorder %v2374, 0
        %vm2407 = vcmp.eq.s32.totalorder %v2375, 0
        %vm2408 = vcmp.eq.s32.totalorder %v2376, 0
        %vm2409 = vcmp.eq.s32.totalorder %v2377, 0
        %vm2410 = vcmp.eq.s32.totalorder %v2378, 0
        %vm2411 = vcmp.eq.s32.totalorder %v2379, 0
        %vm2412 = vcmp.eq.s32.totalorder %v2380, 0
        %vm2413 = vcmp.eq.s32.totalorder %v2381, 0
        %vm2414 = vcmp.eq.s32.totalorder %v2382, 0
        %vm2415 = vcmp.eq.s32.totalorder %v2383, 0
        %vm2416 = vcmp.eq.s32.totalorder %v2384, 0
        %vm2417 = vcmp.eq.s32.totalorder %v2385, 0
        %vm2418 = vcmp.eq.s32.totalorder %v2386, 0
        %vm2419 = vcmp.eq.s32.totalorder %v2387, 0
        %vm2420 = vcmp.eq.s32.totalorder %v2388, 0
        %vm2421 = vcmp.eq.s32.totalorder %v2389, 0
        %vm2422 = vcmp.eq.s32.totalorder %v2390, 0
        %vm2423 = vcmp.eq.s32.totalorder %v2391, 0
        %vm2424 = vcmp.eq.s32.totalorder %v2392, 0
        %vm2425 = vcmp.eq.s32.totalorder %v2393, 0
        %vm2426 = vcmp.eq.s32.totalorder %v2394, 0
        %vm2427 = vcmp.eq.s32.totalorder %v2395, 0
        %vm2428 = vcmp.eq.s32.totalorder %v2396, 0
        %vm2429 = vcmp.eq.s32.totalorder %v2397, 0
        %vm2430 = vcmp.eq.s32.totalorder %v2398, 0
        %vm2431 = vcmp.eq.s32.totalorder %v2399, 0
        %vm2432 = vcmp.eq.s32.totalorder %v2400, 0
        %vm2433 = vcmp.eq.s32.totalorder %v2401, 0
        %vm2434 = vcmp.lt.s32.totalorder %v2370, 0
        %v2435 = vsub.s32 0, %v2370
        %v2436 = vsel %vm2434, %v2435, %v2370
        %vm2437 = vcmp.lt.s32.totalorder %v2371, 0
        %v2438 = vsub.s32 0, %v2371
        %v2439 = vsel %vm2437, %v2438, %v2371
        %vm2440 = vcmp.lt.s32.totalorder %v2372, 0
        %v2441 = vsub.s32 0, %v2372
        %v2442 = vsel %vm2440, %v2441, %v2372
        %vm2443 = vcmp.lt.s32.totalorder %v2373, 0
        %v2444 = vsub.s32 0, %v2373
        %v2445 = vsel %vm2443, %v2444, %v2373
        %vm2446 = vcmp.lt.s32.totalorder %v2374, 0
        %v2447 = vsub.s32 0, %v2374
        %v2448 = vsel %vm2446, %v2447, %v2374
        %vm2449 = vcmp.lt.s32.totalorder %v2375, 0
        %v2450 = vsub.s32 0, %v2375
        %v2451 = vsel %vm2449, %v2450, %v2375
        %vm2452 = vcmp.lt.s32.totalorder %v2376, 0
        %v2453 = vsub.s32 0, %v2376
        %v2454 = vsel %vm2452, %v2453, %v2376
        %vm2455 = vcmp.lt.s32.totalorder %v2377, 0
        %v2456 = vsub.s32 0, %v2377
        %v2457 = vsel %vm2455, %v2456, %v2377
        %vm2458 = vcmp.lt.s32.totalorder %v2378, 0
        %v2459 = vsub.s32 0, %v2378
        %v2460 = vsel %vm2458, %v2459, %v2378
        %vm2461 = vcmp.lt.s32.totalorder %v2379, 0
        %v2462 = vsub.s32 0, %v2379
        %v2463 = vsel %vm2461, %v2462, %v2379
        %vm2464 = vcmp.lt.s32.totalorder %v2380, 0
        %v2465 = vsub.s32 0, %v2380
        %v2466 = vsel %vm2464, %v2465, %v2380
        %vm2467 = vcmp.lt.s32.totalorder %v2381, 0
        %v2468 = vsub.s32 0, %v2381
        %v2469 = vsel %vm2467, %v2468, %v2381
        %vm2470 = vcmp.lt.s32.totalorder %v2382, 0
        %v2471 = vsub.s32 0, %v2382
        %v2472 = vsel %vm2470, %v2471, %v2382
        %vm2473 = vcmp.lt.s32.totalorder %v2383, 0
        %v2474 = vsub.s32 0, %v2383
        %v2475 = vsel %vm2473, %v2474, %v2383
        %vm2476 = vcmp.lt.s32.totalorder %v2384, 0
        %v2477 = vsub.s32 0, %v2384
        %v2478 = vsel %vm2476, %v2477, %v2384
        %vm2479 = vcmp.lt.s32.totalorder %v2385, 0
        %v2480 = vsub.s32 0, %v2385
        %v2481 = vsel %vm2479, %v2480, %v2385
        %vm2482 = vcmp.lt.s32.totalorder %v2386, 0
        %v2483 = vsub.s32 0, %v2386
        %v2484 = vsel %vm2482, %v2483, %v2386
        %vm2485 = vcmp.lt.s32.totalorder %v2387, 0
        %v2486 = vsub.s32 0, %v2387
        %v2487 = vsel %vm2485, %v2486, %v2387
        %vm2488 = vcmp.lt.s32.totalorder %v2388, 0
        %v2489 = vsub.s32 0, %v2388
        %v2490 = vsel %vm2488, %v2489, %v2388
        %vm2491 = vcmp.lt.s32.totalorder %v2389, 0
        %v2492 = vsub.s32 0, %v2389
        %v2493 = vsel %vm2491, %v2492, %v2389
        %vm2494 = vcmp.lt.s32.totalorder %v2390, 0
        %v2495 = vsub.s32 0, %v2390
        %v2496 = vsel %vm2494, %v2495, %v2390
        %vm2497 = vcmp.lt.s32.totalorder %v2391, 0
        %v2498 = vsub.s32 0, %v2391
        %v2499 = vsel %vm2497, %v2498, %v2391
        %vm2500 = vcmp.lt.s32.totalorder %v2392, 0
        %v2501 = vsub.s32 0, %v2392
        %v2502 = vsel %vm2500, %v2501, %v2392
        %vm2503 = vcmp.lt.s32.totalorder %v2393, 0
        %v2504 = vsub.s32 0, %v2393
        %v2505 = vsel %vm2503, %v2504, %v2393
        %vm2506 = vcmp.lt.s32.totalorder %v2394, 0
        %v2507 = vsub.s32 0, %v2394
        %v2508 = vsel %vm2506, %v2507, %v2394
        %vm2509 = vcmp.lt.s32.totalorder %v2395, 0
        %v2510 = vsub.s32 0, %v2395
        %v2511 = vsel %vm2509, %v2510, %v2395
        %vm2512 = vcmp.lt.s32.totalorder %v2396, 0
        %v2513 = vsub.s32 0, %v2396
        %v2514 = vsel %vm2512, %v2513, %v2396
        %vm2515 = vcmp.lt.s32.totalorder %v2397, 0
        %v2516 = vsub.s32 0, %v2397
        %v2517 = vsel %vm2515, %v2516, %v2397
        %vm2518 = vcmp.lt.s32.totalorder %v2398, 0
        %v2519 = vsub.s32 0, %v2398
        %v2520 = vsel %vm2518, %v2519, %v2398
        %vm2521 = vcmp.lt.s32.totalorder %v2399, 0
        %v2522 = vsub.s32 0, %v2399
        %v2523 = vsel %vm2521, %v2522, %v2399
        %vm2524 = vcmp.lt.s32.totalorder %v2400, 0
        %v2525 = vsub.s32 0, %v2400
        %v2526 = vsel %vm2524, %v2525, %v2400
        %vm2527 = vcmp.lt.s32.totalorder %v2401, 0
        %v2528 = vsub.s32 0, %v2401
        %v2529 = vsel %vm2527, %v2528, %v2401
        %vm2530 = vcmp.eq.s32.totalorder %v2436, 128
        %vm2531 = vcmp.eq.s32.totalorder %v2439, 128
        %vm2532 = vcmp.eq.s32.totalorder %v2442, 128
        %vm2533 = vcmp.eq.s32.totalorder %v2445, 128
        %vm2534 = vcmp.eq.s32.totalorder %v2448, 128
        %vm2535 = vcmp.eq.s32.totalorder %v2451, 128
        %vm2536 = vcmp.eq.s32.totalorder %v2454, 128
        %vm2537 = vcmp.eq.s32.totalorder %v2457, 128
        %vm2538 = vcmp.eq.s32.totalorder %v2460, 128
        %vm2539 = vcmp.eq.s32.totalorder %v2463, 128
        %vm2540 = vcmp.eq.s32.totalorder %v2466, 128
        %vm2541 = vcmp.eq.s32.totalorder %v2469, 128
        %vm2542 = vcmp.eq.s32.totalorder %v2472, 128
        %vm2543 = vcmp.eq.s32.totalorder %v2475, 128
        %vm2544 = vcmp.eq.s32.totalorder %v2478, 128
        %vm2545 = vcmp.eq.s32.totalorder %v2481, 128
        %vm2546 = vcmp.eq.s32.totalorder %v2484, 128
        %vm2547 = vcmp.eq.s32.totalorder %v2487, 128
        %vm2548 = vcmp.eq.s32.totalorder %v2490, 128
        %vm2549 = vcmp.eq.s32.totalorder %v2493, 128
        %vm2550 = vcmp.eq.s32.totalorder %v2496, 128
        %vm2551 = vcmp.eq.s32.totalorder %v2499, 128
        %vm2552 = vcmp.eq.s32.totalorder %v2502, 128
        %vm2553 = vcmp.eq.s32.totalorder %v2505, 128
        %vm2554 = vcmp.eq.s32.totalorder %v2508, 128
        %vm2555 = vcmp.eq.s32.totalorder %v2511, 128
        %vm2556 = vcmp.eq.s32.totalorder %v2514, 128
        %vm2557 = vcmp.eq.s32.totalorder %v2517, 128
        %vm2558 = vcmp.eq.s32.totalorder %v2520, 128
        %vm2559 = vcmp.eq.s32.totalorder %v2523, 128
        %vm2560 = vcmp.eq.s32.totalorder %v2526, 128
        %vm2561 = vcmp.eq.s32.totalorder %v2529, 128
        %v2562 = vsel %vm2402, -1e+30, %v2207
        %v2563 = vsel %vm2403, -1e+30, %v2210
        %v2564 = vsel %vm2404, -1e+30, %v2215
        %v2565 = vsel %vm2405, -1e+30, %v2218
        %v2566 = vsel %vm2406, -1e+30, %v2223
        %v2567 = vsel %vm2407, -1e+30, %v2226
        %v2568 = vsel %vm2408, -1e+30, %v2231
        %v2569 = vsel %vm2409, -1e+30, %v2234
        %v2570 = vsel %vm2410, -1e+30, %v2239
        %v2571 = vsel %vm2411, -1e+30, %v2242
        %v2572 = vsel %vm2412, -1e+30, %v2247
        %v2573 = vsel %vm2413, -1e+30, %v2250
        %v2574 = vsel %vm2414, -1e+30, %v2255
        %v2575 = vsel %vm2415, -1e+30, %v2258
        %v2576 = vsel %vm2416, -1e+30, %v2263
        %v2577 = vsel %vm2417, -1e+30, %v2266
        %v2578 = vsel %vm2418, -1e+30, %v2271
        %v2579 = vsel %vm2419, -1e+30, %v2274
        %v2580 = vsel %vm2420, -1e+30, %v2279
        %v2581 = vsel %vm2421, -1e+30, %v2282
        %v2582 = vsel %vm2422, -1e+30, %v2287
        %v2583 = vsel %vm2423, -1e+30, %v2290
        %v2584 = vsel %vm2424, -1e+30, %v2295
        %v2585 = vsel %vm2425, -1e+30, %v2298
        %v2586 = vsel %vm2426, -1e+30, %v2303
        %v2587 = vsel %vm2427, -1e+30, %v2306
        %v2588 = vsel %vm2428, -1e+30, %v2311
        %v2589 = vsel %vm2429, -1e+30, %v2314
        %v2590 = vsel %vm2430, -1e+30, %v2319
        %v2591 = vsel %vm2431, -1e+30, %v2322
        %v2592 = vsel %vm2432, -1e+30, %v2327
        %v2593 = vsel %vm2433, -1e+30, %v2330
        %v2594 = vmax.f32 %v2562, %v2566
        %v2595 = vmax.f32 %v2563, %v2567
        %v2596 = vmax.f32 %v2564, %v2568
        %v2597 = vmax.f32 %v2565, %v2569
        %v2598 = vmax.f32 %v2594, %v2570
        %v2599 = vmax.f32 %v2595, %v2571
        %v2600 = vmax.f32 %v2596, %v2572
        %v2601 = vmax.f32 %v2597, %v2573
        %v2602 = vmax.f32 %v2598, %v2574
        %v2603 = vmax.f32 %v2599, %v2575
        %v2604 = vmax.f32 %v2600, %v2576
        %v2605 = vmax.f32 %v2601, %v2577
        %v2606 = vmax.f32 %v2602, %v2578
        %v2607 = vmax.f32 %v2603, %v2579
        %v2608 = vmax.f32 %v2604, %v2580
        %v2609 = vmax.f32 %v2605, %v2581
        %v2610 = vmax.f32 %v2606, %v2582
        %v2611 = vmax.f32 %v2607, %v2583
        %v2612 = vmax.f32 %v2608, %v2584
        %v2613 = vmax.f32 %v2609, %v2585
        %v2614 = vmax.f32 %v2610, %v2586
        %v2615 = vmax.f32 %v2611, %v2587
        %v2616 = vmax.f32 %v2612, %v2588
        %v2617 = vmax.f32 %v2613, %v2589
        %v2618 = vmax.f32 %v2614, %v2590
        %v2619 = vmax.f32 %v2615, %v2591
        %v2620 = vmax.f32 %v2616, %v2592
        %v2621 = vmax.f32 %v2617, %v2593
        %v2622 = vmax.f32 %v2618, %v2619
        %v2623 = vmax.f32 %v2620, %v2621
        %v2624 = vmax.f32 %v2622, %v2623
        %v2625 = vrot.slane %v2624, 4
        %v2626 = vmax.f32 %v2624, %v2625
        %v2627 = vrot.slane %v2626, 2
        %v2628 = vmax.f32 %v2626, %v2627
        %v2629 = vrot.slane %v2628, 1
        %v2630 = vmax.f32 %v2628, %v2629
        %v2631 = vsub.f32 %v2562, %v2630
        %v2632 = vsub.f32 %v2563, %v2630
        %v2633 = vsub.f32 %v2564, %v2630
        %v2634 = vsub.f32 %v2565, %v2630
        %v2635 = vsub.f32 %v2566, %v2630
        %v2636 = vsub.f32 %v2567, %v2630
        %v2637 = vsub.f32 %v2568, %v2630
        %v2638 = vsub.f32 %v2569, %v2630
        %v2639 = vsub.f32 %v2570, %v2630
        %v2640 = vsub.f32 %v2571, %v2630
        %v2641 = vsub.f32 %v2572, %v2630
        %v2642 = vsub.f32 %v2573, %v2630
        %v2643 = vsub.f32 %v2574, %v2630
        %v2644 = vsub.f32 %v2575, %v2630
        %v2645 = vsub.f32 %v2576, %v2630
        %v2646 = vsub.f32 %v2577, %v2630
        %v2647 = vsub.f32 %v2578, %v2630
        %v2648 = vsub.f32 %v2579, %v2630
        %v2649 = vsub.f32 %v2580, %v2630
        %v2650 = vsub.f32 %v2581, %v2630
        %v2651 = vsub.f32 %v2582, %v2630
        %v2652 = vsub.f32 %v2583, %v2630
        %v2653 = vsub.f32 %v2584, %v2630
        %v2654 = vsub.f32 %v2585, %v2630
        %v2655 = vsub.f32 %v2586, %v2630
        %v2656 = vsub.f32 %v2587, %v2630
        %v2657 = vsub.f32 %v2588, %v2630
        %v2658 = vsub.f32 %v2589, %v2630
        %v2659 = vsub.f32 %v2590, %v2630
        %v2660 = vsub.f32 %v2591, %v2630
        %v2661 = vsub.f32 %v2592, %v2630
        %v2662 = vsub.f32 %v2593, %v2630
        %v2663 = vmul.f32 %v2631, 1.442695
        %v2664 = vpow.pop %v2663
        %v2665 = vmul.f32 %v2632, 1.442695
        %v2666 = vpow.pop %v2665
        %v2667 = vmul.f32 %v2633, 1.442695
        %v2668 = vpow.pop %v2667
        %v2669 = vmul.f32 %v2634, 1.442695
        %v2670 = vpow.pop %v2669
        %v2671 = vmul.f32 %v2635, 1.442695
        %v2672 = vpow.pop %v2671
        %v2673 = vmul.f32 %v2636, 1.442695
        %v2674 = vpow.pop %v2673
        %v2675 = vmul.f32 %v2637, 1.442695
        %v2676 = vpow.pop %v2675
        %v2677 = vmul.f32 %v2638, 1.442695
        %v2678 = vpow.pop %v2677
        %v2679 = vmul.f32 %v2639, 1.442695
        %v2680 = vpow.pop %v2679
        %v2681 = vmul.f32 %v2640, 1.442695
        %v2682 = vpow.pop %v2681
        %v2683 = vmul.f32 %v2641, 1.442695
        %v2684 = vpow.pop %v2683
        %v2685 = vmul.f32 %v2642, 1.442695
        %v2686 = vpow.pop %v2685
        %v2687 = vmul.f32 %v2643, 1.442695
        %v2688 = vpow.pop %v2687
        %v2689 = vmul.f32 %v2644, 1.442695
        %v2690 = vpow.pop %v2689
        %v2691 = vmul.f32 %v2645, 1.442695
        %v2692 = vpow.pop %v2691
        %v2693 = vmul.f32 %v2646, 1.442695
        %v2694 = vpow.pop %v2693
        %v2695 = vmul.f32 %v2647, 1.442695
        %v2696 = vpow.pop %v2695
        %v2697 = vmul.f32 %v2648, 1.442695
        %v2698 = vpow.pop %v2697
        %v2699 = vmul.f32 %v2649, 1.442695
        %v2700 = vpow.pop %v2699
        %v2701 = vmul.f32 %v2650, 1.442695
        %v2702 = vpow.pop %v2701
        %v2703 = vmul.f32 %v2651, 1.442695
        %v2704 = vpow.pop %v2703
        %v2705 = vmul.f32 %v2652, 1.442695
        %v2706 = vpow.pop %v2705
        %v2707 = vmul.f32 %v2653, 1.442695
        %v2708 = vpow.pop %v2707
        %v2709 = vmul.f32 %v2654, 1.442695
        %v2710 = vpow.pop %v2709
        %v2711 = vmul.f32 %v2655, 1.442695
        %v2712 = vpow.pop %v2711
        %v2713 = vmul.f32 %v2656, 1.442695
        %v2714 = vpow.pop %v2713
        %v2715 = vmul.f32 %v2657, 1.442695
        %v2716 = vpow.pop %v2715
        %v2717 = vmul.f32 %v2658, 1.442695
        %v2718 = vpow.pop %v2717
        %v2719 = vmul.f32 %v2659, 1.442695
        %v2720 = vpow.pop %v2719
        %v2721 = vmul.f32 %v2660, 1.442695
        %v2722 = vpow.pop %v2721
        %v2723 = vmul.f32 %v2661, 1.442695
        %v2724 = vpow.pop %v2723
        %v2725 = vmul.f32 %v2662, 1.442695
        %v2726 = vpow.pop %v2725
        %v2727 = vadd.f32 %v2664, %v2666
        %v2728 = vadd.f32 %v2727, %v2668
        %v2729 = vadd.f32 %v2728, %v2670
        %v2730 = vadd.f32 %v2729, %v2672
        %v2731 = vadd.f32 %v2730, %v2674
        %v2732 = vadd.f32 %v2731, %v2676
        %v2733 = vadd.f32 %v2732, %v2678
        %v2734 = vadd.f32 %v2733, %v2680
        %v2735 = vadd.f32 %v2734, %v2682
        %v2736 = vadd.f32 %v2735, %v2684
        %v2737 = vadd.f32 %v2736, %v2686
        %v2738 = vadd.f32 %v2737, %v2688
        %v2739 = vadd.f32 %v2738, %v2690
        %v2740 = vadd.f32 %v2739, %v2692
        %v2741 = vadd.f32 %v2740, %v2694
        %v2742 = vadd.f32 %v2741, %v2696
        %v2743 = vadd.f32 %v2742, %v2698
        %v2744 = vadd.f32 %v2743, %v2700
        %v2745 = vadd.f32 %v2744, %v2702
        %v2746 = vadd.f32 %v2745, %v2704
        %v2747 = vadd.f32 %v2746, %v2706
        %v2748 = vadd.f32 %v2747, %v2708
        %v2749 = vadd.f32 %v2748, %v2710
        %v2750 = vadd.f32 %v2749, %v2712
        %v2751 = vadd.f32 %v2750, %v2714
        %v2752 = vadd.f32 %v2751, %v2716
        %v2753 = vadd.f32 %v2752, %v2718
        %v2754 = vadd.f32 %v2753, %v2720
        %v2755 = vadd.f32 %v2754, %v2722
        %v2756 = vadd.f32 %v2755, %v2724
        %v2757 = vadd.f32 %v2756, %v2726
        %v2758 = vrot.slane %v2757, 4
        %v2759 = vadd.f32 %v2757, %v2758
        %v2760 = vrot.slane %v2759, 2
        %v2761 = vadd.f32 %v2759, %v2760
        %v2762 = vrot.slane %v2761, 1
        %v2763 = vadd.f32 %v2761, %v2762
        %v2764 = vlog2.pop %v2763
        %v2765 = vmul.f32 %v2764, 0.6931472
        %v2766 = vadd.f32 %v2630, %v2765
        %v2767 = vsel %vm2530, %v2207, 0.0
        %v2768 = vsel %vm2531, %v2210, 0.0
        %v2769 = vsel %vm2532, %v2215, 0.0
        %v2770 = vsel %vm2533, %v2218, 0.0
        %v2771 = vsel %vm2534, %v2223, 0.0
        %v2772 = vsel %vm2535, %v2226, 0.0
        %v2773 = vsel %vm2536, %v2231, 0.0
        %v2774 = vsel %vm2537, %v2234, 0.0
        %v2775 = vsel %vm2538, %v2239, 0.0
        %v2776 = vsel %vm2539, %v2242, 0.0
        %v2777 = vsel %vm2540, %v2247, 0.0
        %v2778 = vsel %vm2541, %v2250, 0.0
        %v2779 = vsel %vm2542, %v2255, 0.0
        %v2780 = vsel %vm2543, %v2258, 0.0
        %v2781 = vsel %vm2544, %v2263, 0.0
        %v2782 = vsel %vm2545, %v2266, 0.0
        %v2783 = vsel %vm2546, %v2271, 0.0
        %v2784 = vsel %vm2547, %v2274, 0.0
        %v2785 = vsel %vm2548, %v2279, 0.0
        %v2786 = vsel %vm2549, %v2282, 0.0
        %v2787 = vsel %vm2550, %v2287, 0.0
        %v2788 = vsel %vm2551, %v2290, 0.0
        %v2789 = vsel %vm2552, %v2295, 0.0
        %v2790 = vsel %vm2553, %v2298, 0.0
        %v2791 = vsel %vm2554, %v2303, 0.0
        %v2792 = vsel %vm2555, %v2306, 0.0
        %v2793 = vsel %vm2556, %v2311, 0.0
        %v2794 = vsel %vm2557, %v2314, 0.0
        %v2795 = vsel %vm2558, %v2319, 0.0
        %v2796 = vsel %vm2559, %v2322, 0.0
        %v2797 = vsel %vm2560, %v2327, 0.0
        %v2798 = vsel %vm2561, %v2330, 0.0
        %v2799 = vadd.f32 %v2767, %v2768
        %v2800 = vadd.f32 %v2799, %v2769
        %v2801 = vadd.f32 %v2800, %v2770
        %v2802 = vadd.f32 %v2801, %v2771
        %v2803 = vadd.f32 %v2802, %v2772
        %v2804 = vadd.f32 %v2803, %v2773
        %v2805 = vadd.f32 %v2804, %v2774
        %v2806 = vadd.f32 %v2805, %v2775
        %v2807 = vadd.f32 %v2806, %v2776
        %v2808 = vadd.f32 %v2807, %v2777
        %v2809 = vadd.f32 %v2808, %v2778
        %v2810 = vadd.f32 %v2809, %v2779
        %v2811 = vadd.f32 %v2810, %v2780
        %v2812 = vadd.f32 %v2811, %v2781
        %v2813 = vadd.f32 %v2812, %v2782
        %v2814 = vadd.f32 %v2813, %v2783
        %v2815 = vadd.f32 %v2814, %v2784
        %v2816 = vadd.f32 %v2815, %v2785
        %v2817 = vadd.f32 %v2816, %v2786
        %v2818 = vadd.f32 %v2817, %v2787
        %v2819 = vadd.f32 %v2818, %v2788
        %v2820 = vadd.f32 %v2819, %v2789
        %v2821 = vadd.f32 %v2820, %v2790
        %v2822 = vadd.f32 %v2821, %v2791
        %v2823 = vadd.f32 %v2822, %v2792
        %v2824 = vadd.f32 %v2823, %v2793
        %v2825 = vadd.f32 %v2824, %v2794
        %v2826 = vadd.f32 %v2825, %v2795
        %v2827 = vadd.f32 %v2826, %v2796
        %v2828 = vadd.f32 %v2827, %v2797
        %v2829 = vadd.f32 %v2828, %v2798
        %v2830 = vrot.slane %v2829, 4
        %v2831 = vadd.f32 %v2829, %v2830
        %v2832 = vrot.slane %v2831, 2
        %v2833 = vadd.f32 %v2831, %v2832
        %v2834 = vrot.slane %v2833, 1
        %v2835 = vadd.f32 %v2833, %v2834
        %v2836 = vld [vmem:[#allocation3] sm:$0x1]
        %v2837 = vsub.f32 %v2766, %v2835
        %2838 = vadd.xlane.f32.xlu0 %v2837
        %v2839 = vpop.xlane.xlu0 %2838
        %v2840 = vadd.f32 %v2836, %v2839
        %vm2841 = vcmask 0
        %2842 = vst.msk [vmem:[#allocation3] sm:$0x1] %vm2841, %v2840
        %p2843 = scmp.eq.s32.totalorder %s16, 1
        // Predicated region
        $region41: #{tpu_custom_call.1} parent=27 // pred_check
          %p2844 = pneg %p2843
        $region42: #{tpu_custom_call.1} parent=27 // pred_check_branch
          %2846 = sbr.rel (%p2844) target = $region44
        $region43: #{tpu_custom_call.1} parent=27 // pred_region
          %v2847 = vld [vmem:[#allocation3] sm:$0x1]
          %v2848 = vmul.f32 %v2847, 0.00390625
          %2849 = vst.msk [vmem:[#allocation9] sm:$0x1] %vm2841, %v2848
        $region44: #{tpu_custom_call.1} parent=27 // pred_fallthru
          _
        // Predicated region
        $region45: #{tpu_custom_call.1} parent=27 // pred_check
          %p2850 = pneg %p71
        $region46: #{tpu_custom_call.1} parent=27 // pred_check_branch
          %2852 = sbr.rel (%p2850) target = $region48
        $region47: #{tpu_custom_call.1} parent=27 // pred_region
          %s2854 = ssub.s32 16, 16
          %2855 = vsyncadd [#allocation6], %s2854
          %s2857 = sshll.u32 [#allocation9], 4
          %s2858 = int_to_ptr.vmem [resolvable:$true] %s2857
          %2860 = dma.vmem_to_hbm [thread:$0]  %s2858, 16, %s2, [#allocation6]
        $region48: #{tpu_custom_call.1} parent=27 // pred_fallthru
          _
        // Predicated region
        $region49: #{tpu_custom_call.1} parent=27 // pred_check
          %p2861 = pneg %p71
        $region50: #{tpu_custom_call.1} parent=27 // pred_check_branch
          %2863 = sbr.rel (%p2861) target = $region52
        $region51: #{tpu_custom_call.1} parent=27 // pred_region
          %2864 = dma.done [#allocation6], 16
        $region52: #{tpu_custom_call.1} parent=27 // pred_fallthru
          _
      $region28: #{tpu_custom_call.1} parent=5 // pred_fallthru
        _
      %p2865 = scmp.le.s32.totalorder 2, %s11
      // Predicated region
      $region53: #{tpu_custom_call.1} parent=5 // pred_check
        %p2866 = pneg %p2865
      $region54: #{tpu_custom_call.1} parent=5 // pred_check_branch
        %2868 = sbr.rel (%p2866) target = $region56
      $region55: #{tpu_custom_call.1} parent=5 // pred_region
        %s2869 = ssub.s32 %s11, 2
      $region56: #{tpu_custom_call.1} parent=5 // pred_fallthru
        _
    $region6: #{tpu_custom_call.1} parent=1 // loop_footer
      %s15 = sadd.s32 1, %s11
    $region7: #{tpu_custom_call.1} parent=1 // loop_footer_branch
      %10 = sbr.rel target = $region3
    $region8: #{tpu_custom_call.1} parent=1 // loop_exit
      _
    %2870 = vsyncpa [#allocation5], 1
    %s2871 = scalar_lea.sflag [#allocation5], 1
    %2872 = vsyncpa %s2871, 1
    %2873 = vsyncpa [#allocation8], 1
    %2874 = vsyncpa [#allocation6], 1
    %s2875 = scalar_lea.sflag [#allocation6], 1
    %2876 = vsyncpa %s2875, 1

</llo_original>
